<compile_context>
chip_gen: v7x
topology: tpu7x:2x2x1
jax: 0.10.0
libtpu: 0.0.40
codegen_flags: <defaults>
</compile_context>

<pallas_src>
import functools

import jax
import jax.numpy as jnp
from jax.experimental import pallas as pl
from jax.experimental.pallas import tpu as pltpu


def _lstm_kernel(x_ref, h0_ref, c0_ref, w_ih_t_ref, w_hh_t_ref, b_ref,
                 w_fc_t_ref, b_fc_ref,
                 out_ref, hn_ref, cn_ref,
                 gx_scr, hs_scr, *, seq_len, hidden_size):
    S = seq_len
    H = hidden_size

    # Batched input projection for all timesteps at once: (S, 4H), bias folded.
    # Stored to VMEM scratch so the recurrence reads rows via the vld slot.
    gx_scr[...] = (jnp.dot(x_ref[...], w_ih_t_ref[...],
                           preferred_element_type=jnp.float32)
                   + b_ref[...])

    w_hh_t = w_hh_t_ref[...]            # (H, 4H), loaded once

    h = h0_ref[...]                     # (1, H)
    c = c0_ref[...]                     # (1, H)

    # Sequential recurrence, fully unrolled (static trip count S).
    # PyTorch gate order: i, f, g, o.
    for t in range(S):
        gates = gx_scr[t:t + 1, :] + jnp.dot(
            h, w_hh_t, preferred_element_type=jnp.float32)        # (1, 4H)

        # Two full-width EUP pushes instead of five narrow ones.
        sg = jax.nn.sigmoid(gates)                                # (1, 4H)
        tg = jnp.tanh(gates)                                      # (1, 4H)
        i_g = sg[:, 0 * H:1 * H]
        f_g = sg[:, 1 * H:2 * H]
        g_g = tg[:, 2 * H:3 * H]
        o_g = sg[:, 3 * H:4 * H]

        c = f_g * c + i_g * g_g
        h = o_g * jnp.tanh(c)
        hs_scr[t:t + 1, :] = h          # static-row store into (S, H) scratch

    hn_ref[...] = h                     # (1, H)
    cn_ref[...] = c                     # (1, H)

    # FC + log_softmax for all timesteps at once.  w_fc_t / b_fc are lane-
    # padded to 128 (zeros / -1e30) so padded lanes contribute exp(.)==0 and
    # the real-lane log-softmax is exact; output is a single unmasked slab.
    hs = hs_scr[...]                    # (S, H)
    y = jnp.dot(hs, w_fc_t_ref[...],
                preferred_element_type=jnp.float32) + b_fc_ref[...]   # (S, Opad)
    y = y - jnp.max(y, axis=-1, keepdims=True)
    lse = jnp.log(jnp.sum(jnp.exp(y), axis=-1, keepdims=True))
    out_ref[...] = y - lse              # single lane-dense (S, Opad) store


def lstm_forward(x, h, params):
    """Pallas equivalent of LSTM.forward(x, h) for batch=1.

    x: (seq, 1, input_size) f32
    h: tuple (h0, c0), each (1, 1, hidden_size) f32
    returns (out, (h_n, c_n)) with out (seq, output_size) f32
    """
    h0, c0 = h
    w_ih, w_hh, b_ih, b_hh, w_fc, b_fc = params
    S, B, I = x.shape
    H = h0.shape[-1]
    O = w_fc.shape[0]
    assert B == 1, "kernel assumes batch=1 (as implied by initHidden())"

    # Glue: drop the size-1 batch dim, pre-transpose weights, fold biases.
    x2d = x.reshape(S, I)
    h0_2d = h0.reshape(1, H)
    c0_2d = c0.reshape(1, H)
    w_ih_t = w_ih.T                      # (I, 4H)
    w_hh_t = w_hh.T                      # (H, 4H)
    b = (b_ih + b_hh)[None, :]           # (1, 4H)

    # Lane-dense FC: pad output dim to a multiple of 128 lanes.
    O_pad = max(128, pl.cdiv(O, 128) * 128)
    w_fc_t = w_fc.T                      # (H, O)
    if O_pad != O:
        w_fc_t = jnp.concatenate(
            [w_fc_t, jnp.zeros((H, O_pad - O), jnp.float32)], axis=1)
        # Large finite negative (NOT -inf) so padded lanes never win the max
        # and exp() underflows cleanly to 0 — keeps log-softmax NaN-free.
        b_fc_pad = jnp.concatenate(
            [b_fc, jnp.full((O_pad - O,), -1e30, jnp.float32)])[None, :]
    else:
        b_fc_pad = b_fc[None, :]

    kernel = functools.partial(_lstm_kernel, seq_len=S, hidden_size=H)

    vmem = pltpu.MemorySpace.VMEM
    out_pad, h_n, c_n = pl.pallas_call(
        kernel,
        out_shape=(
            jax.ShapeDtypeStruct((S, O_pad), jnp.float32),
            jax.ShapeDtypeStruct((1, H), jnp.float32),
            jax.ShapeDtypeStruct((1, H), jnp.float32),
        ),
        in_specs=[pl.BlockSpec(memory_space=vmem)] * 8,
        out_specs=(
            pl.BlockSpec(memory_space=vmem),
            pl.BlockSpec(memory_space=vmem),
            pl.BlockSpec(memory_space=vmem),
        ),
        scratch_shapes=[
            pltpu.VMEM((S, 4 * H), jnp.float32),   # gates_x rows
            pltpu.VMEM((S, H), jnp.float32),       # h_t rows
        ],
    )(x2d, h0_2d, c0_2d, w_ih_t, w_hh_t, b, w_fc_t, b_fc_pad)

    out = out_pad[:, :O]
    return out, (h_n.reshape(1, 1, H), c_n.reshape(1, 1, H))


def _reference(x, h, params):
    """Pure-JAX reference (mirrors PyTorch nn.LSTM + Linear + LogSoftmax)."""
    h0, c0 = h
    w_ih, w_hh, b_ih, b_hh, w_fc, b_fc = params
    H = h0.shape[-1]

    def step(carry, x_t):
        h_prev, c_prev = carry          # (1, H) each
        gates = x_t @ w_ih.T + b_ih + h_prev @ w_hh.T + b_hh
        i = jax.nn.sigmoid(gates[:, 0 * H:1 * H])
        f = jax.nn.sigmoid(gates[:, 1 * H:2 * H])
        g = jnp.tanh(gates[:, 2 * H:3 * H])
        o = jax.nn.sigmoid(gates[:, 3 * H:4 * H])
        c = f * c_prev + i * g
        h_new = o * jnp.tanh(c)
        return (h_new, c), h_new

    (h_n, c_n), hs = jax.lax.scan(step, (h0[0], c0[0]), x)      # hs: (S, 1, H)
    hs = hs[:, 0, :]                                            # squeeze batch
    y = hs @ w_fc.T + b_fc
    out = jax.nn.log_softmax(y, axis=-1)
    return out, (h_n[None], c_n[None])


if __name__ == "__main__":
    # Small shapes implied by the module: batch=1 (initHidden), seq=8.
    seq_len, input_size, hidden_size, output_size = 8, 16, 32, 10
    cell_size = hidden_size  # nn.LSTM forces cell size == hidden size

    key = jax.random.PRNGKey(0)
    ks = jax.random.split(key, 8)
    bound = 1.0 / (hidden_size ** 0.5)  # PyTorch default uniform init range

    w_ih = jax.random.uniform(ks[0], (4 * hidden_size, input_size), jnp.float32, -bound, bound)
    w_hh = jax.random.uniform(ks[1], (4 * hidden_size, hidden_size), jnp.float32, -bound, bound)
    b_ih = jax.random.uniform(ks[2], (4 * hidden_size,), jnp.float32, -bound, bound)
    b_hh = jax.random.uniform(ks[3], (4 * hidden_size,), jnp.float32, -bound, bound)
    w_fc = jax.random.uniform(ks[4], (output_size, hidden_size), jnp.float32, -bound, bound)
    b_fc = jax.random.uniform(ks[5], (output_size,), jnp.float32, -bound, bound)
    params = (w_ih, w_hh, b_ih, b_hh, w_fc, b_fc)

    x = jax.random.normal(ks[6], (seq_len, 1, input_size), jnp.float32)
    h0 = jnp.zeros((1, 1, hidden_size), jnp.float32)
    c0 = jnp.zeros((1, 1, cell_size), jnp.float32)

    out, (h_n, c_n) = lstm_forward(x, (h0, c0), params)
    jax.block_until_ready((out, h_n, c_n))

    ref_out, (ref_hn, ref_cn) = _reference(x, (h0, c0), params)
    assert out.shape == (seq_len, output_size)
    assert jnp.allclose(out, ref_out, atol=1e-5, rtol=1e-5)
    assert jnp.allclose(h_n, ref_hn, atol=1e-5, rtol=1e-5)
    assert jnp.allclose(c_n, ref_cn, atol=1e-5, rtol=1e-5)

    print("KERNEL_OK")
</pallas_src>

<mosaic_0001>
module attributes {stable_mosaic.version = 11 : i64} {
  func.func @_lstm_kernel(%arg0: memref<8x16xf32, #tpu.memory_space<vmem>>, %arg1: memref<1x32xf32, #tpu.memory_space<vmem>>, %arg2: memref<1x32xf32, #tpu.memory_space<vmem>>, %arg3: memref<16x128xf32, #tpu.memory_space<vmem>>, %arg4: memref<32x128xf32, #tpu.memory_space<vmem>>, %arg5: memref<1x128xf32, #tpu.memory_space<vmem>>, %arg6: memref<32x128xf32, #tpu.memory_space<vmem>>, %arg7: memref<1x128xf32, #tpu.memory_space<vmem>>, %arg8: memref<8x128xf32, #tpu.memory_space<vmem>>, %arg9: memref<1x32xf32, #tpu.memory_space<vmem>>, %arg10: memref<1x32xf32, #tpu.memory_space<vmem>>, %arg11: memref<8x128xf32, #tpu.memory_space<vmem>>, %arg12: memref<8x32xf32, #tpu.memory_space<vmem>>) attributes {dimension_semantics = [], scalar_prefetch = 0 : i64, scratch_operands = 2 : i64, tpu.core_type = #tpu.core_type<tc>} {
    %c0 = arith.constant 0 : index
    %c0_0 = arith.constant 0 : index
    %0 = vector.load %arg0[%c0, %c0_0] : memref<8x16xf32, #tpu.memory_space<vmem>>, vector<8x16xf32>
    %c0_1 = arith.constant 0 : index
    %c0_2 = arith.constant 0 : index
    %1 = vector.load %arg3[%c0_1, %c0_2] : memref<16x128xf32, #tpu.memory_space<vmem>>, vector<16x128xf32>
    %cst = arith.constant dense<0.000000e+00> : vector<8x128xf32>
    %2 = tpu.matmul %0, %1, %cst {dimension_numbers = #tpu.dot_dimension_numbers<[1], [0], [0], [1], [0, 0, 1, 1], [], []>} : vector<8x16xf32>, vector<16x128xf32>, vector<8x128xf32> -> vector<8x128xf32>
    %c0_3 = arith.constant 0 : index
    %c0_4 = arith.constant 0 : index
    %3 = vector.load %arg5[%c0_3, %c0_4] : memref<1x128xf32, #tpu.memory_space<vmem>>, vector<1x128xf32>
    %4 = vector.broadcast %3 : vector<1x128xf32> to vector<8x128xf32>
    %5 = arith.addf %2, %4 : vector<8x128xf32>
    %c0_5 = arith.constant 0 : index
    %c0_6 = arith.constant 0 : index
    %6 = vector.load %arg11[%c0_5, %c0_6] : memref<8x128xf32, #tpu.memory_space<vmem>>, vector<8x128xf32>
    tpu.vector_store %arg11[%c0_5, %c0_6], %5 {strides = array<i32>} : memref<8x128xf32, #tpu.memory_space<vmem>>, vector<8x128xf32>,
    %c0_7 = arith.constant 0 : index
    %c0_8 = arith.constant 0 : index
    %7 = vector.load %arg4[%c0_7, %c0_8] : memref<32x128xf32, #tpu.memory_space<vmem>>, vector<32x128xf32>
    %c0_9 = arith.constant 0 : index
    %c0_10 = arith.constant 0 : index
    %8 = vector.load %arg1[%c0_9, %c0_10] : memref<1x32xf32, #tpu.memory_space<vmem>>, vector<1x32xf32>
    %c0_11 = arith.constant 0 : index
    %c0_12 = arith.constant 0 : index
    %9 = vector.load %arg2[%c0_11, %c0_12] : memref<1x32xf32, #tpu.memory_space<vmem>>, vector<1x32xf32>
    %c0_13 = arith.constant 0 : index
    %c0_14 = arith.constant 0 : index
    %10 = vector.load %arg11[%c0_13, %c0_14] : memref<8x128xf32, #tpu.memory_space<vmem>>, vector<1x128xf32>
    %cst_15 = arith.constant dense<0.000000e+00> : vector<1x128xf32>
    %11 = tpu.matmul %8, %7, %cst_15 {dimension_numbers = #tpu.dot_dimension_numbers<[1], [0], [0], [1], [0, 0, 1, 1], [], []>} : vector<1x32xf32>, vector<32x128xf32>, vector<1x128xf32> -> vector<1x128xf32>
    %12 = arith.addf %10, %11 : vector<1x128xf32>
    %13 = arith.negf %12 : vector<1x128xf32>
    %14 = math.exp %13 : vector<1x128xf32>
    %cst_16 = arith.constant 1.000000e+00 : f32
    %15 = vector.broadcast %cst_16 : f32 to vector<1x128xf32>
    %16 = arith.addf %15, %14 : vector<1x128xf32>
    %17 = arith.divf %15, %16 : vector<1x128xf32>
    %18 = math.tanh %12 : vector<1x128xf32>
    %19 = vector.extract_strided_slice %17 {offsets = [0, 0], sizes = [1, 32], strides = [1, 1]} : vector<1x128xf32> to vector<1x32xf32>
    %20 = vector.extract_strided_slice %17 {offsets = [0, 32], sizes = [1, 32], strides = [1, 1]} : vector<1x128xf32> to vector<1x32xf32>
    %21 = vector.extract_strided_slice %18 {offsets = [0, 64], sizes = [1, 32], strides = [1, 1]} : vector<1x128xf32> to vector<1x32xf32>
    %22 = vector.extract_strided_slice %17 {offsets = [0, 96], sizes = [1, 32], strides = [1, 1]} : vector<1x128xf32> to vector<1x32xf32>
    %23 = arith.mulf %20, %9 : vector<1x32xf32>
    %24 = arith.mulf %19, %21 : vector<1x32xf32>
    %25 = arith.addf %23, %24 : vector<1x32xf32>
    %26 = math.tanh %25 : vector<1x32xf32>
    %27 = arith.mulf %22, %26 : vector<1x32xf32>
    %c0_17 = arith.constant 0 : index
    %c0_18 = arith.constant 0 : index
    %28 = vector.load %arg12[%c0_17, %c0_18] : memref<8x32xf32, #tpu.memory_space<vmem>>, vector<1x32xf32>
    tpu.vector_store %arg12[%c0_17, %c0_18], %27 {strides = array<i32>} : memref<8x32xf32, #tpu.memory_space<vmem>>, vector<1x32xf32>,
    %c1 = arith.constant 1 : index
    %c0_19 = arith.constant 0 : index
    %29 = vector.load %arg11[%c1, %c0_19] : memref<8x128xf32, #tpu.memory_space<vmem>>, vector<1x128xf32>
    %cst_20 = arith.constant dense<0.000000e+00> : vector<1x128xf32>
    %30 = tpu.matmul %27, %7, %cst_20 {dimension_numbers = #tpu.dot_dimension_numbers<[1], [0], [0], [1], [0, 0, 1, 1], [], []>} : vector<1x32xf32>, vector<32x128xf32>, vector<1x128xf32> -> vector<1x128xf32>
    %31 = arith.addf %29, %30 : vector<1x128xf32>
    %32 = arith.negf %31 : vector<1x128xf32>
    %33 = math.exp %32 : vector<1x128xf32>
    %cst_21 = arith.constant 1.000000e+00 : f32
    %34 = vector.broadcast %cst_21 : f32 to vector<1x128xf32>
    %35 = arith.addf %34, %33 : vector<1x128xf32>
    %36 = arith.divf %34, %35 : vector<1x128xf32>
    %37 = math.tanh %31 : vector<1x128xf32>
    %38 = vector.extract_strided_slice %36 {offsets = [0, 0], sizes = [1, 32], strides = [1, 1]} : vector<1x128xf32> to vector<1x32xf32>
    %39 = vector.extract_strided_slice %36 {offsets = [0, 32], sizes = [1, 32], strides = [1, 1]} : vector<1x128xf32> to vector<1x32xf32>
    %40 = vector.extract_strided_slice %37 {offsets = [0, 64], sizes = [1, 32], strides = [1, 1]} : vector<1x128xf32> to vector<1x32xf32>
    %41 = vector.extract_strided_slice %36 {offsets = [0, 96], sizes = [1, 32], strides = [1, 1]} : vector<1x128xf32> to vector<1x32xf32>
    %42 = arith.mulf %39, %25 : vector<1x32xf32>
    %43 = arith.mulf %38, %40 : vector<1x32xf32>
    %44 = arith.addf %42, %43 : vector<1x32xf32>
    %45 = math.tanh %44 : vector<1x32xf32>
    %46 = arith.mulf %41, %45 : vector<1x32xf32>
    %c1_22 = arith.constant 1 : index
    %c0_23 = arith.constant 0 : index
    %47 = vector.load %arg12[%c1_22, %c0_23] : memref<8x32xf32, #tpu.memory_space<vmem>>, vector<1x32xf32>
    tpu.vector_store %arg12[%c1_22, %c0_23], %46 {strides = array<i32>} : memref<8x32xf32, #tpu.memory_space<vmem>>, vector<1x32xf32>,
    %c2 = arith.constant 2 : index
    %c0_24 = arith.constant 0 : index
    %48 = vector.load %arg11[%c2, %c0_24] : memref<8x128xf32, #tpu.memory_space<vmem>>, vector<1x128xf32>
    %cst_25 = arith.constant dense<0.000000e+00> : vector<1x128xf32>
    %49 = tpu.matmul %46, %7, %cst_25 {dimension_numbers = #tpu.dot_dimension_numbers<[1], [0], [0], [1], [0, 0, 1, 1], [], []>} : vector<1x32xf32>, vector<32x128xf32>, vector<1x128xf32> -> vector<1x128xf32>
    %50 = arith.addf %48, %49 : vector<1x128xf32>
    %51 = arith.negf %50 : vector<1x128xf32>
    %52 = math.exp %51 : vector<1x128xf32>
    %cst_26 = arith.constant 1.000000e+00 : f32
    %53 = vector.broadcast %cst_26 : f32 to vector<1x128xf32>
    %54 = arith.addf %53, %52 : vector<1x128xf32>
    %55 = arith.divf %53, %54 : vector<1x128xf32>
    %56 = math.tanh %50 : vector<1x128xf32>
    %57 = vector.extract_strided_slice %55 {offsets = [0, 0], sizes = [1, 32], strides = [1, 1]} : vector<1x128xf32> to vector<1x32xf32>
    %58 = vector.extract_strided_slice %55 {offsets = [0, 32], sizes = [1, 32], strides = [1, 1]} : vector<1x128xf32> to vector<1x32xf32>
    %59 = vector.extract_strided_slice %56 {offsets = [0, 64], sizes = [1, 32], strides = [1, 1]} : vector<1x128xf32> to vector<1x32xf32>
    %60 = vector.extract_strided_slice %55 {offsets = [0, 96], sizes = [1, 32], strides = [1, 1]} : vector<1x128xf32> to vector<1x32xf32>
    %61 = arith.mulf %58, %44 : vector<1x32xf32>
    %62 = arith.mulf %57, %59 : vector<1x32xf32>
    %63 = arith.addf %61, %62 : vector<1x32xf32>
    %64 = math.tanh %63 : vector<1x32xf32>
    %65 = arith.mulf %60, %64 : vector<1x32xf32>
    %c2_27 = arith.constant 2 : index
    %c0_28 = arith.constant 0 : index
    %66 = vector.load %arg12[%c2_27, %c0_28] : memref<8x32xf32, #tpu.memory_space<vmem>>, vector<1x32xf32>
    tpu.vector_store %arg12[%c2_27, %c0_28], %65 {strides = array<i32>} : memref<8x32xf32, #tpu.memory_space<vmem>>, vector<1x32xf32>,
    %c3 = arith.constant 3 : index
    %c0_29 = arith.constant 0 : index
    %67 = vector.load %arg11[%c3, %c0_29] : memref<8x128xf32, #tpu.memory_space<vmem>>, vector<1x128xf32>
    %cst_30 = arith.constant dense<0.000000e+00> : vector<1x128xf32>
    %68 = tpu.matmul %65, %7, %cst_30 {dimension_numbers = #tpu.dot_dimension_numbers<[1], [0], [0], [1], [0, 0, 1, 1], [], []>} : vector<1x32xf32>, vector<32x128xf32>, vector<1x128xf32> -> vector<1x128xf32>
    %69 = arith.addf %67, %68 : vector<1x128xf32>
    %70 = arith.negf %69 : vector<1x128xf32>
    %71 = math.exp %70 : vector<1x128xf32>
    %cst_31 = arith.constant 1.000000e+00 : f32
    %72 = vector.broadcast %cst_31 : f32 to vector<1x128xf32>
    %73 = arith.addf %72, %71 : vector<1x128xf32>
    %74 = arith.divf %72, %73 : vector<1x128xf32>
    %75 = math.tanh %69 : vector<1x128xf32>
    %76 = vector.extract_strided_slice %74 {offsets = [0, 0], sizes = [1, 32], strides = [1, 1]} : vector<1x128xf32> to vector<1x32xf32>
    %77 = vector.extract_strided_slice %74 {offsets = [0, 32], sizes = [1, 32], strides = [1, 1]} : vector<1x128xf32> to vector<1x32xf32>
    %78 = vector.extract_strided_slice %75 {offsets = [0, 64], sizes = [1, 32], strides = [1, 1]} : vector<1x128xf32> to vector<1x32xf32>
    %79 = vector.extract_strided_slice %74 {offsets = [0, 96], sizes = [1, 32], strides = [1, 1]} : vector<1x128xf32> to vector<1x32xf32>
    %80 = arith.mulf %77, %63 : vector<1x32xf32>
    %81 = arith.mulf %76, %78 : vector<1x32xf32>
    %82 = arith.addf %80, %81 : vector<1x32xf32>
    %83 = math.tanh %82 : vector<1x32xf32>
    %84 = arith.mulf %79, %83 : vector<1x32xf32>
    %c3_32 = arith.constant 3 : index
    %c0_33 = arith.constant 0 : index
    %85 = vector.load %arg12[%c3_32, %c0_33] : memref<8x32xf32, #tpu.memory_space<vmem>>, vector<1x32xf32>
    tpu.vector_store %arg12[%c3_32, %c0_33], %84 {strides = array<i32>} : memref<8x32xf32, #tpu.memory_space<vmem>>, vector<1x32xf32>,
    %c4 = arith.constant 4 : index
    %c0_34 = arith.constant 0 : index
    %86 = vector.load %arg11[%c4, %c0_34] : memref<8x128xf32, #tpu.memory_space<vmem>>, vector<1x128xf32>
    %cst_35 = arith.constant dense<0.000000e+00> : vector<1x128xf32>
    %87 = tpu.matmul %84, %7, %cst_35 {dimension_numbers = #tpu.dot_dimension_numbers<[1], [0], [0], [1], [0, 0, 1, 1], [], []>} : vector<1x32xf32>, vector<32x128xf32>, vector<1x128xf32> -> vector<1x128xf32>
    %88 = arith.addf %86, %87 : vector<1x128xf32>
    %89 = arith.negf %88 : vector<1x128xf32>
    %90 = math.exp %89 : vector<1x128xf32>
    %cst_36 = arith.constant 1.000000e+00 : f32
    %91 = vector.broadcast %cst_36 : f32 to vector<1x128xf32>
    %92 = arith.addf %91, %90 : vector<1x128xf32>
    %93 = arith.divf %91, %92 : vector<1x128xf32>
    %94 = math.tanh %88 : vector<1x128xf32>
    %95 = vector.extract_strided_slice %93 {offsets = [0, 0], sizes = [1, 32], strides = [1, 1]} : vector<1x128xf32> to vector<1x32xf32>
    %96 = vector.extract_strided_slice %93 {offsets = [0, 32], sizes = [1, 32], strides = [1, 1]} : vector<1x128xf32> to vector<1x32xf32>
    %97 = vector.extract_strided_slice %94 {offsets = [0, 64], sizes = [1, 32], strides = [1, 1]} : vector<1x128xf32> to vector<1x32xf32>
    %98 = vector.extract_strided_slice %93 {offsets = [0, 96], sizes = [1, 32], strides = [1, 1]} : vector<1x128xf32> to vector<1x32xf32>
    %99 = arith.mulf %96, %82 : vector<1x32xf32>
    %100 = arith.mulf %95, %97 : vector<1x32xf32>
    %101 = arith.addf %99, %100 : vector<1x32xf32>
    %102 = math.tanh %101 : vector<1x32xf32>
    %103 = arith.mulf %98, %102 : vector<1x32xf32>
    %c4_37 = arith.constant 4 : index
    %c0_38 = arith.constant 0 : index
    %104 = vector.load %arg12[%c4_37, %c0_38] : memref<8x32xf32, #tpu.memory_space<vmem>>, vector<1x32xf32>
    tpu.vector_store %arg12[%c4_37, %c0_38], %103 {strides = array<i32>} : memref<8x32xf32, #tpu.memory_space<vmem>>, vector<1x32xf32>,
    %c5 = arith.constant 5 : index
    %c0_39 = arith.constant 0 : index
    %105 = vector.load %arg11[%c5, %c0_39] : memref<8x128xf32, #tpu.memory_space<vmem>>, vector<1x128xf32>
    %cst_40 = arith.constant dense<0.000000e+00> : vector<1x128xf32>
    %106 = tpu.matmul %103, %7, %cst_40 {dimension_numbers = #tpu.dot_dimension_numbers<[1], [0], [0], [1], [0, 0, 1, 1], [], []>} : vector<1x32xf32>, vector<32x128xf32>, vector<1x128xf32> -> vector<1x128xf32>
    %107 = arith.addf %105, %106 : vector<1x128xf32>
    %108 = arith.negf %107 : vector<1x128xf32>
    %109 = math.exp %108 : vector<1x128xf32>
    %cst_41 = arith.constant 1.000000e+00 : f32
    %110 = vector.broadcast %cst_41 : f32 to vector<1x128xf32>
    %111 = arith.addf %110, %109 : vector<1x128xf32>
    %112 = arith.divf %110, %111 : vector<1x128xf32>
    %113 = math.tanh %107 : vector<1x128xf32>
    %114 = vector.extract_strided_slice %112 {offsets = [0, 0], sizes = [1, 32], strides = [1, 1]} : vector<1x128xf32> to vector<1x32xf32>
    %115 = vector.extract_strided_slice %112 {offsets = [0, 32], sizes = [1, 32], strides = [1, 1]} : vector<1x128xf32> to vector<1x32xf32>
    %116 = vector.extract_strided_slice %113 {offsets = [0, 64], sizes = [1, 32], strides = [1, 1]} : vector<1x128xf32> to vector<1x32xf32>
    %117 = vector.extract_strided_slice %112 {offsets = [0, 96], sizes = [1, 32], strides = [1, 1]} : vector<1x128xf32> to vector<1x32xf32>
    %118 = arith.mulf %115, %101 : vector<1x32xf32>
    %119 = arith.mulf %114, %116 : vector<1x32xf32>
    %120 = arith.addf %118, %119 : vector<1x32xf32>
    %121 = math.tanh %120 : vector<1x32xf32>
    %122 = arith.mulf %117, %121 : vector<1x32xf32>
    %c5_42 = arith.constant 5 : index
    %c0_43 = arith.constant 0 : index
    %123 = vector.load %arg12[%c5_42, %c0_43] : memref<8x32xf32, #tpu.memory_space<vmem>>, vector<1x32xf32>
    tpu.vector_store %arg12[%c5_42, %c0_43], %122 {strides = array<i32>} : memref<8x32xf32, #tpu.memory_space<vmem>>, vector<1x32xf32>,
    %c6 = arith.constant 6 : index
    %c0_44 = arith.constant 0 : index
    %124 = vector.load %arg11[%c6, %c0_44] : memref<8x128xf32, #tpu.memory_space<vmem>>, vector<1x128xf32>
    %cst_45 = arith.constant dense<0.000000e+00> : vector<1x128xf32>
    %125 = tpu.matmul %122, %7, %cst_45 {dimension_numbers = #tpu.dot_dimension_numbers<[1], [0], [0], [1], [0, 0, 1, 1], [], []>} : vector<1x32xf32>, vector<32x128xf32>, vector<1x128xf32> -> vector<1x128xf32>
    %126 = arith.addf %124, %125 : vector<1x128xf32>
    %127 = arith.negf %126 : vector<1x128xf32>
    %128 = math.exp %127 : vector<1x128xf32>
    %cst_46 = arith.constant 1.000000e+00 : f32
    %129 = vector.broadcast %cst_46 : f32 to vector<1x128xf32>
    %130 = arith.addf %129, %128 : vector<1x128xf32>
    %131 = arith.divf %129, %130 : vector<1x128xf32>
    %132 = math.tanh %126 : vector<1x128xf32>
    %133 = vector.extract_strided_slice %131 {offsets = [0, 0], sizes = [1, 32], strides = [1, 1]} : vector<1x128xf32> to vector<1x32xf32>
    %134 = vector.extract_strided_slice %131 {offsets = [0, 32], sizes = [1, 32], strides = [1, 1]} : vector<1x128xf32> to vector<1x32xf32>
    %135 = vector.extract_strided_slice %132 {offsets = [0, 64], sizes = [1, 32], strides = [1, 1]} : vector<1x128xf32> to vector<1x32xf32>
    %136 = vector.extract_strided_slice %131 {offsets = [0, 96], sizes = [1, 32], strides = [1, 1]} : vector<1x128xf32> to vector<1x32xf32>
    %137 = arith.mulf %134, %120 : vector<1x32xf32>
    %138 = arith.mulf %133, %135 : vector<1x32xf32>
    %139 = arith.addf %137, %138 : vector<1x32xf32>
    %140 = math.tanh %139 : vector<1x32xf32>
    %141 = arith.mulf %136, %140 : vector<1x32xf32>
    %c6_47 = arith.constant 6 : index
    %c0_48 = arith.constant 0 : index
    %142 = vector.load %arg12[%c6_47, %c0_48] : memref<8x32xf32, #tpu.memory_space<vmem>>, vector<1x32xf32>
    tpu.vector_store %arg12[%c6_47, %c0_48], %141 {strides = array<i32>} : memref<8x32xf32, #tpu.memory_space<vmem>>, vector<1x32xf32>,
    %c7 = arith.constant 7 : index
    %c0_49 = arith.constant 0 : index
    %143 = vector.load %arg11[%c7, %c0_49] : memref<8x128xf32, #tpu.memory_space<vmem>>, vector<1x128xf32>
    %cst_50 = arith.constant dense<0.000000e+00> : vector<1x128xf32>
    %144 = tpu.matmul %141, %7, %cst_50 {dimension_numbers = #tpu.dot_dimension_numbers<[1], [0], [0], [1], [0, 0, 1, 1], [], []>} : vector<1x32xf32>, vector<32x128xf32>, vector<1x128xf32> -> vector<1x128xf32>
    %145 = arith.addf %143, %144 : vector<1x128xf32>
    %146 = arith.negf %145 : vector<1x128xf32>
    %147 = math.exp %146 : vector<1x128xf32>
    %cst_51 = arith.constant 1.000000e+00 : f32
    %148 = vector.broadcast %cst_51 : f32 to vector<1x128xf32>
    %149 = arith.addf %148, %147 : vector<1x128xf32>
    %150 = arith.divf %148, %149 : vector<1x128xf32>
    %151 = math.tanh %145 : vector<1x128xf32>
    %152 = vector.extract_strided_slice %150 {offsets = [0, 0], sizes = [1, 32], strides = [1, 1]} : vector<1x128xf32> to vector<1x32xf32>
    %153 = vector.extract_strided_slice %150 {offsets = [0, 32], sizes = [1, 32], strides = [1, 1]} : vector<1x128xf32> to vector<1x32xf32>
    %154 = vector.extract_strided_slice %151 {offsets = [0, 64], sizes = [1, 32], strides = [1, 1]} : vector<1x128xf32> to vector<1x32xf32>
    %155 = vector.extract_strided_slice %150 {offsets = [0, 96], sizes = [1, 32], strides = [1, 1]} : vector<1x128xf32> to vector<1x32xf32>
    %156 = arith.mulf %153, %139 : vector<1x32xf32>
    %157 = arith.mulf %152, %154 : vector<1x32xf32>
    %158 = arith.addf %156, %157 : vector<1x32xf32>
    %159 = math.tanh %158 : vector<1x32xf32>
    %160 = arith.mulf %155, %159 : vector<1x32xf32>
    %c7_52 = arith.constant 7 : index
    %c0_53 = arith.constant 0 : index
    %161 = vector.load %arg12[%c7_52, %c0_53] : memref<8x32xf32, #tpu.memory_space<vmem>>, vector<1x32xf32>
    tpu.vector_store %arg12[%c7_52, %c0_53], %160 {strides = array<i32>} : memref<8x32xf32, #tpu.memory_space<vmem>>, vector<1x32xf32>,
    %c0_54 = arith.constant 0 : index
    %c0_55 = arith.constant 0 : index
    %162 = vector.load %arg9[%c0_54, %c0_55] : memref<1x32xf32, #tpu.memory_space<vmem>>, vector<1x32xf32>
    tpu.vector_store %arg9[%c0_54, %c0_55], %160 {strides = array<i32>} : memref<1x32xf32, #tpu.memory_space<vmem>>, vector<1x32xf32>,
    %c0_56 = arith.constant 0 : index
    %c0_57 = arith.constant 0 : index
    %163 = vector.load %arg10[%c0_56, %c0_57] : memref<1x32xf32, #tpu.memory_space<vmem>>, vector<1x32xf32>
    tpu.vector_store %arg10[%c0_56, %c0_57], %158 {strides = array<i32>} : memref<1x32xf32, #tpu.memory_space<vmem>>, vector<1x32xf32>,
    %c0_58 = arith.constant 0 : index
    %c0_59 = arith.constant 0 : index
    %164 = vector.load %arg12[%c0_58, %c0_59] : memref<8x32xf32, #tpu.memory_space<vmem>>, vector<8x32xf32>
    %c0_60 = arith.constant 0 : index
    %c0_61 = arith.constant 0 : index
    %165 = vector.load %arg6[%c0_60, %c0_61] : memref<32x128xf32, #tpu.memory_space<vmem>>, vector<32x128xf32>
    %cst_62 = arith.constant dense<0.000000e+00> : vector<8x128xf32>
    %166 = tpu.matmul %164, %165, %cst_62 {dimension_numbers = #tpu.dot_dimension_numbers<[1], [0], [0], [1], [0, 0, 1, 1], [], []>} : vector<8x32xf32>, vector<32x128xf32>, vector<8x128xf32> -> vector<8x128xf32>
    %c0_63 = arith.constant 0 : index
    %c0_64 = arith.constant 0 : index
    %167 = vector.load %arg7[%c0_63, %c0_64] : memref<1x128xf32, #tpu.memory_space<vmem>>, vector<1x128xf32>
    %168 = vector.broadcast %167 : vector<1x128xf32> to vector<8x128xf32>
    %169 = arith.addf %166, %168 : vector<8x128xf32>
    %cst_65 = arith.constant dense<0xFF800000> : vector<8xf32>
    %170 = vector.multi_reduction <maximumf>, %169, %cst_65 [1] : vector<8x128xf32> to vector<8xf32>
    %171 = vector.shape_cast %170 : vector<8xf32> to vector<8x1xf32>
    %172 = vector.broadcast %171 : vector<8x1xf32> to vector<8x128xf32>
    %173 = arith.subf %169, %172 : vector<8x128xf32>
    %174 = math.exp %173 : vector<8x128xf32>
    %cst_66 = arith.constant dense<0.000000e+00> : vector<8xf32>
    %175 = vector.multi_reduction <add>, %174, %cst_66 [1] : vector<8x128xf32> to vector<8xf32>
    %176 = vector.shape_cast %175 : vector<8xf32> to vector<8x1xf32>
    %177 = math.log %176 : vector<8x1xf32>
    %178 = vector.broadcast %177 : vector<8x1xf32> to vector<8x128xf32>
    %179 = arith.subf %173, %178 : vector<8x128xf32>
    %c0_67 = arith.constant 0 : index
    %c0_68 = arith.constant 0 : index
    %180 = vector.load %arg8[%c0_67, %c0_68] : memref<8x128xf32, #tpu.memory_space<vmem>>, vector<8x128xf32>
    tpu.vector_store %arg8[%c0_67, %c0_68], %179 {strides = array<i32>} : memref<8x128xf32, #tpu.memory_space<vmem>>, vector<8x128xf32>,
    return
  }
}

</mosaic_0001>

<llo_original>
// kernel: tpu_custom_call.1
$region0: #{tpu_custom_call.1}
  #allocation0 [shape = 'u32[]', space=smem, size = 0x4, offset = 0x4, fixed_abs, tag = 'smem constant byte address 0x4 - core index']
  #allocation1 [shape = 'u32[144,128]{1,0:T(1,128)}', space=vmem, size = 0x12000, scoped, tag = 'internal scratch']
  #allocation2 [shape = 'f32[8,128]{1,0:T(8,128)}', space=vmem, size = 0x1000, scoped, tag = 'scratch operand']
  #allocation3 [shape = 'f32[8,32]{1,0:T(8,128)}', space=vmem, size = 0x1000, scoped, tag = 'scratch operand']
  %s0 = inlined_call_operand.hbm [shape: f32[8,16], index: 0, kind: input, shape index: {}]
  %s1 = inlined_call_operand.vmem [shape: f32[1,32], index: 1, kind: input, shape index: {}]
  %s2 = inlined_call_operand.vmem [shape: f32[1,32], index: 2, kind: input, shape index: {}]
  %s3 = inlined_call_operand.hbm [shape: f32[16,128], index: 3, kind: input, shape index: {}]
  %s4 = inlined_call_operand.hbm [shape: f32[32,128], index: 4, kind: input, shape index: {}]
  %s5 = inlined_call_operand.vmem [shape: f32[1,128], index: 5, kind: input, shape index: {}]
  %s6 = inlined_call_operand.hbm [shape: f32[32,128], index: 6, kind: input, shape index: {}]
  %s7 = inlined_call_operand.vmem [shape: f32[1,128], index: 7, kind: input, shape index: {}]
  %s8 = inlined_call_operand.hbm [shape: f32[8,128], index: 8, kind: output, shape index: {0}]
  %s9 = inlined_call_operand.hbm [shape: f32[1,32], index: 9, kind: output, shape index: {1}]
  %s10 = inlined_call_operand.hbm [shape: f32[1,32], index: 10, kind: output, shape index: {2}]
  %11 = xla_tuple %s8, %s9, %s10
  %s12 = sld [smem:[#allocation0]]
  $region74: #{tpu_custom_call.1} parent=0
    _
  %s14 = ssub.s32 1, %s12
  %s15 = scalar_select 0, %s14, %s12
  $region1: #{tpu_custom_call.1} parent=0
    #allocation4 [shape = 'u8[4096]{0}', space=vmem, size = 0x1000, scoped, tag = 'input window, operand 0, single buffered']
    #allocation5 [shape = 's32[1]{0}', space=sflag, size = 0x4, scoped, tag = 'scoped memory for tpu_custom_call.1']
    #allocation6 [shape = 's32[1]{0}', space=sflag, size = 0x4, scoped, tag = 'scoped memory for tpu_custom_call.1']
    #allocation7 [shape = 'u8[8192]{0}', space=vmem, size = 0x2000, scoped, tag = 'input window, operand 3, single buffered']
    #allocation8 [shape = 's32[1]{0}', space=sflag, size = 0x4, scoped, tag = 'scoped memory for tpu_custom_call.1']
    #allocation9 [shape = 'u8[16384]{0}', space=vmem, size = 0x4000, scoped, tag = 'input window, operand 4, single buffered']
    #allocation10 [shape = 'u8[16384]{0}', space=vmem, size = 0x4000, scoped, tag = 'input window, operand 6, single buffered']
    #allocation11 [shape = 's32[1]{0}', space=sflag, size = 0x4, scoped, tag = 'scoped memory for tpu_custom_call.1']
    #allocation12 [shape = 'u8[4096]{0}', space=vmem, size = 0x1000, scoped, tag = 'output window, operand 0, single buffered']
    #allocation13 [shape = 'u8[512]{0}', space=vmem, size = 0x400, scoped, tag = 'output window, operand 1, single buffered']
    #allocation14 [shape = 's32[1]{0}', space=sflag, size = 0x4, scoped, tag = 'scoped memory for tpu_custom_call.1']
    #allocation15 [shape = 'u8[512]{0}', space=vmem, size = 0x400, scoped, tag = 'output window, operand 2, single buffered']
    %16 = vsyncpa [#allocation5], 0
    %17 = vsyncpa [#allocation8], 0
    %18 = vsyncpa [#allocation11], 0
    %19 = vsyncpa [#allocation6], 0
    %20 = vsyncpa [#allocation14], 0
    // Predicated region
    $region2: #{tpu_custom_call.1} parent=1 // pred_check
      _
    $region3: #{tpu_custom_call.1} parent=1 // pred_check_branch
      %22 = sbr.rel (0) target = $region5
    $region4: #{tpu_custom_call.1} parent=1 // pred_region
      %s24 = ssub.s32 128, 128
      %25 = vsyncadd [#allocation5], %s24
      %s27 = sshll.u32 [#allocation4], 4
      %s28 = int_to_ptr.vmem [resolvable:$true] %s27
      %30 = dma.hbm_to_vmem [thread:$0]  %s0, 128, %s28, [#allocation5]
    $region5: #{tpu_custom_call.1} parent=1 // pred_fallthru
      _
    // Predicated region
    $region6: #{tpu_custom_call.1} parent=1 // pred_check
      _
    $region7: #{tpu_custom_call.1} parent=1 // pred_check_branch
      %32 = sbr.rel (0) target = $region9
    $region8: #{tpu_custom_call.1} parent=1 // pred_region
      _
    $region9: #{tpu_custom_call.1} parent=1 // pred_fallthru
      _
    // Predicated region
    $region10: #{tpu_custom_call.1} parent=1 // pred_check
      _
    $region11: #{tpu_custom_call.1} parent=1 // pred_check_branch
      %34 = sbr.rel (0) target = $region13
    $region12: #{tpu_custom_call.1} parent=1 // pred_region
      _
    $region13: #{tpu_custom_call.1} parent=1 // pred_fallthru
      _
    // Predicated region
    $region14: #{tpu_custom_call.1} parent=1 // pred_check
      _
    $region15: #{tpu_custom_call.1} parent=1 // pred_check_branch
      %36 = sbr.rel (0) target = $region17
    $region16: #{tpu_custom_call.1} parent=1 // pred_region
      %s38 = ssub.s32 256, 256
      %39 = vsyncadd [#allocation8], %s38
      %s40 = sshll.u32 [#allocation7], 4
      %s41 = int_to_ptr.vmem [resolvable:$true] %s40
      %46 = dma.hbm_to_vmem [thread:$0]  %s3, 256, %s41, [#allocation8], 128, 128, 8
    $region17: #{tpu_custom_call.1} parent=1 // pred_fallthru
      _
    // Predicated region
    $region18: #{tpu_custom_call.1} parent=1 // pred_check
      _
    $region19: #{tpu_custom_call.1} parent=1 // pred_check_branch
      %48 = sbr.rel (0) target = $region21
    $region20: #{tpu_custom_call.1} parent=1 // pred_region
      %s50 = ssub.s32 512, 512
      %51 = vsyncadd [#allocation8], %s50
      %s52 = sshll.u32 [#allocation9], 4
      %s53 = int_to_ptr.vmem [resolvable:$true] %s52
      %58 = dma.hbm_to_vmem [thread:$0]  %s4, 512, %s53, [#allocation8], 128, 128, 8
    $region21: #{tpu_custom_call.1} parent=1 // pred_fallthru
      _
    // Predicated region
    $region22: #{tpu_custom_call.1} parent=1 // pred_check
      _
    $region23: #{tpu_custom_call.1} parent=1 // pred_check_branch
      %60 = sbr.rel (0) target = $region25
    $region24: #{tpu_custom_call.1} parent=1 // pred_region
      _
    $region25: #{tpu_custom_call.1} parent=1 // pred_fallthru
      _
    // Predicated region
    $region26: #{tpu_custom_call.1} parent=1 // pred_check
      _
    $region27: #{tpu_custom_call.1} parent=1 // pred_check_branch
      %62 = sbr.rel (0) target = $region29
    $region28: #{tpu_custom_call.1} parent=1 // pred_region
      %s64 = ssub.s32 512, 512
      %65 = vsyncadd [#allocation11], %s64
      %s66 = sshll.u32 [#allocation10], 4
      %s67 = int_to_ptr.vmem [resolvable:$true] %s66
      %72 = dma.hbm_to_vmem [thread:$0]  %s6, 512, %s67, [#allocation11], 128, 128, 8
    $region29: #{tpu_custom_call.1} parent=1 // pred_fallthru
      _
    // Predicated region
    $region30: #{tpu_custom_call.1} parent=1 // pred_check
      _
    $region31: #{tpu_custom_call.1} parent=1 // pred_check_branch
      %74 = sbr.rel (0) target = $region33
    $region32: #{tpu_custom_call.1} parent=1 // pred_region
      _
    $region33: #{tpu_custom_call.1} parent=1 // pred_fallthru
      _
    // Predicated region
    $region34: #{tpu_custom_call.1} parent=1 // pred_check
      _
    $region35: #{tpu_custom_call.1} parent=1 // pred_check_branch
      %76 = sbr.rel (0) target = $region37
    $region36: #{tpu_custom_call.1} parent=1 // pred_region
      %77 = dma.done [#allocation5], 128
    $region37: #{tpu_custom_call.1} parent=1 // pred_fallthru
      _
    // Predicated region
    $region38: #{tpu_custom_call.1} parent=1 // pred_check
      _
    $region39: #{tpu_custom_call.1} parent=1 // pred_check_branch
      %79 = sbr.rel (0) target = $region41
    $region40: #{tpu_custom_call.1} parent=1 // pred_region
      %80 = dma.done [#allocation8], 256
    $region41: #{tpu_custom_call.1} parent=1 // pred_fallthru
      _
    // Predicated region
    $region42: #{tpu_custom_call.1} parent=1 // pred_check
      _
    $region43: #{tpu_custom_call.1} parent=1 // pred_check_branch
      %82 = sbr.rel (0) target = $region45
    $region44: #{tpu_custom_call.1} parent=1 // pred_region
      %83 = dma.done [#allocation8], 512
    $region45: #{tpu_custom_call.1} parent=1 // pred_fallthru
      _
    // Predicated region
    $region46: #{tpu_custom_call.1} parent=1 // pred_check
      _
    $region47: #{tpu_custom_call.1} parent=1 // pred_check_branch
      %85 = sbr.rel (0) target = $region49
    $region48: #{tpu_custom_call.1} parent=1 // pred_region
      %86 = dma.done [#allocation11], 512
    $region49: #{tpu_custom_call.1} parent=1 // pred_fallthru
      _
    %v87 = vld [vmem:[#allocation4] sm:$0xff]
    %v88 = vld [vmem:[#allocation7] sm:$0xff]
    %v89 = vld [vmem:[#allocation7 + $0x8] sm:$0xff]
    %v90 = vld [vmem:[%s5] sm:$0x1]
    %v92 = vlaneseq
    %v93 = vshrl.u32 %v92, 7
    %v94 = vsub.s32 0, %v93
    %v95 = vrot.slane %v90, %v94
    %vm97 = vcmask 130048
    %v99 = vsel %vm97, %v87, 0
    %101 = vmatprep.subr.mxu0 0.0
    %102 = vmatpush1.msra.mxu0 %v88
    %103 = vmatprep.subr.mxu0 0.0
    %104 = vmatpush1.msra.mxu0 %v89
    %105 = vmatprep.subr.mxu0 0.0
    %106 = vmatpush1.msra.mxu0 0.0
    %107 = vmatprep.subr.mxu0 0.0
    %108 = vmatpush1.msra.mxu0 0.0
    %109 = vmatprep.subr.mxu0 0.0
    %110 = vmatpush1.msra.mxu0 0.0
    %111 = vmatprep.subr.mxu0 0.0
    %112 = vmatpush1.msra.mxu0 0.0
    %113 = vmatprep.subr.mxu0 0.0
    %114 = vmatpush1.msra.mxu0 0.0
    %115 = vmatprep.subr.mxu0 0.0
    %116 = vmatpush1.msra.mxu0 0.0
    %117 = vmatprep.subr.mxu0 0.0
    %118 = vmatpush1.msra.mxu0 0.0
    %119 = vmatprep.subr.mxu0 0.0
    %120 = vmatpush1.msra.mxu0 0.0
    %121 = vmatprep.subr.mxu0 0.0
    %122 = vmatpush1.msra.mxu0 0.0
    %123 = vmatprep.subr.mxu0 0.0
    %124 = vmatpush1.msra.mxu0 0.0
    %125 = vmatprep.subr.mxu0 0.0
    %126 = vmatpush1.msra.mxu0 0.0
    %127 = vmatprep.subr.mxu0 0.0
    %128 = vmatpush1.msra.mxu0 0.0
    %129 = vmatprep.subr.mxu0 0.0
    %130 = vmatpush1.msra.mxu0 0.0
    %131 = vmatprep.subr.mxu0 0.0
    %132 = vmatpush1.msra.mxu0 0.0
    %133 = vmatprep.subr.mxu0 0.0
    %134 = vmatpush1.msra.mxu0 0.0
    %135 = vmatprep.subr.mxu0 0.0
    %136 = vmatpush1.msra.mxu0 0.0
    %137 = vmatprep.subr.mxu0 0.0
    %138 = vmatpush1.msra.mxu0 0.0
    %139 = vmatprep.subr.mxu0 0.0
    %140 = vmatpush1.msra.mxu0 0.0
    %141 = vmatprep.subr.mxu0 0.0
    %142 = vmatpush1.msra.mxu0 0.0
    %143 = vmatprep.subr.mxu0 0.0
    %144 = vmatpush1.msra.mxu0 0.0
    %145 = vmatprep.subr.mxu0 0.0
    %146 = vmatpush1.msra.mxu0 0.0
    %147 = vmatprep.subr.mxu0 0.0
    %148 = vmatpush1.msra.mxu0 0.0
    %149 = vmatprep.subr.mxu0 0.0
    %150 = vmatpush1.msra.mxu0 0.0
    %151 = vmatprep.subr.mxu0 0.0
    %152 = vmatpush1.msra.mxu0 0.0
    %153 = vmatprep.subr.mxu0 0.0
    %154 = vmatpush1.msra.mxu0 0.0
    %155 = vmatprep.subr.mxu0 0.0
    %156 = vmatpush1.msra.mxu0 0.0
    %157 = vmatprep.subr.mxu0 0.0
    %158 = vmatpush1.msra.mxu0 0.0
    %159 = vmatprep.subr.mxu0 0.0
    %160 = vmatpush1.msra.mxu0 0.0
    %161 = vmatprep.subr.mxu0 0.0
    %162 = vmatpush1.msra.mxu0 0.0
    %163 = vmatprep.subr.mxu0 0.0
    %164 = vmatpush1.msra.mxu0 0.0
    %165 = vmatprep.mubr.f32.mxu0 0.0
    %166 = vmatmul.mubr.f32.gmra.mrb[0].mxu0 %v99
    %v167 = vpop.f32.mrb[0].mxu0
    %v168 = vadd.f32 %v95, %v167
    %v169 = vpop.f32.mrb[0].mxu0
    %170 = vdwg.mxu0
    %171 = vst [vmem:[#allocation2] sm:$0xff] %v168
    %v172 = vld [vmem:[#allocation9] sm:$0xff]
    %v173 = vld [vmem:[#allocation9 + $0x8] sm:$0xff]
    %v174 = vld [vmem:[#allocation9 + $0x10] sm:$0xff]
    %v175 = vld [vmem:[#allocation9 + $0x18] sm:$0xff]
    %v176 = vld [vmem:[%s1] sm:$0x1]
    %v177 = vld [vmem:[%s2] sm:$0x1]
    %v178 = vld [vmem:[#allocation2] sm:$0x1]
    %vm179 = vcmask 261120
    %v181 = vsel %vm179, %v176, 0
    %183 = vmatprep.subr.mxu0 0.0
    %184 = vmatpush1.msra.mxu0 %v172
    %185 = vmatprep.subr.mxu0 0.0
    %186 = vmatpush1.msra.mxu0 %v173
    %187 = vmatprep.subr.mxu0 0.0
    %188 = vmatpush1.msra.mxu0 %v174
    %189 = vmatprep.subr.mxu0 0.0
    %190 = vmatpush1.msra.mxu0 %v175
    %191 = vmatprep.subr.mxu0 0.0
    %192 = vmatpush1.msra.mxu0 0.0
    %193 = vmatprep.subr.mxu0 0.0
    %194 = vmatpush1.msra.mxu0 0.0
    %195 = vmatprep.subr.mxu0 0.0
    %196 = vmatpush1.msra.mxu0 0.0
    %197 = vmatprep.subr.mxu0 0.0
    %198 = vmatpush1.msra.mxu0 0.0
    %199 = vmatprep.subr.mxu0 0.0
    %200 = vmatpush1.msra.mxu0 0.0
    %201 = vmatprep.subr.mxu0 0.0
    %202 = vmatpush1.msra.mxu0 0.0
    %203 = vmatprep.subr.mxu0 0.0
    %204 = vmatpush1.msra.mxu0 0.0
    %205 = vmatprep.subr.mxu0 0.0
    %206 = vmatpush1.msra.mxu0 0.0
    %207 = vmatprep.subr.mxu0 0.0
    %208 = vmatpush1.msra.mxu0 0.0
    %209 = vmatprep.subr.mxu0 0.0
    %210 = vmatpush1.msra.mxu0 0.0
    %211 = vmatprep.subr.mxu0 0.0
    %212 = vmatpush1.msra.mxu0 0.0
    %213 = vmatprep.subr.mxu0 0.0
    %214 = vmatpush1.msra.mxu0 0.0
    %215 = vmatprep.subr.mxu0 0.0
    %216 = vmatpush1.msra.mxu0 0.0
    %217 = vmatprep.subr.mxu0 0.0
    %218 = vmatpush1.msra.mxu0 0.0
    %219 = vmatprep.subr.mxu0 0.0
    %220 = vmatpush1.msra.mxu0 0.0
    %221 = vmatprep.subr.mxu0 0.0
    %222 = vmatpush1.msra.mxu0 0.0
    %223 = vmatprep.subr.mxu0 0.0
    %224 = vmatpush1.msra.mxu0 0.0
    %225 = vmatprep.subr.mxu0 0.0
    %226 = vmatpush1.msra.mxu0 0.0
    %227 = vmatprep.subr.mxu0 0.0
    %228 = vmatpush1.msra.mxu0 0.0
    %229 = vmatprep.subr.mxu0 0.0
    %230 = vmatpush1.msra.mxu0 0.0
    %231 = vmatprep.subr.mxu0 0.0
    %232 = vmatpush1.msra.mxu0 0.0
    %233 = vmatprep.subr.mxu0 0.0
    %234 = vmatpush1.msra.mxu0 0.0
    %235 = vmatprep.subr.mxu0 0.0
    %236 = vmatpush1.msra.mxu0 0.0
    %237 = vmatprep.subr.mxu0 0.0
    %238 = vmatpush1.msra.mxu0 0.0
    %239 = vmatprep.subr.mxu0 0.0
    %240 = vmatpush1.msra.mxu0 0.0
    %241 = vmatprep.subr.mxu0 0.0
    %242 = vmatpush1.msra.mxu0 0.0
    %243 = vmatprep.subr.mxu0 0.0
    %244 = vmatpush1.msra.mxu0 0.0
    %245 = vmatprep.subr.mxu0 0.0
    %246 = vmatpush1.msra.mxu0 0.0
    %247 = vmatprep.mubr.f32.mxu0 0.0
    %248 = vmatmul.mubr.f32.gmra.mrb[0].mxu0 %v181
    %v249 = vpop.f32.mrb[0].mxu0
    %v250 = vadd.f32 0.0, %v249
    %v251 = vpop.f32.mrb[0].mxu0
    %252 = vdwg.mxu0
    %v253 = vadd.f32 %v178, %v250
    %v254 = vxor.u32 %v253, 2147483648
    %v255 = vmul.f32 %v254, 1.442695
    %v256 = vpow.pop %v255
    %v257 = vadd.f32 %v256, 1.0
    %v258 = vrcp.pop %v257
    %v259 = vmul.f32 1.0, %v258
    %v260 = vtanh.pop %v253
    %v262 = vlaneseq
    %v263 = vshrl.u32 %v262, 7
    %v264 = vsub.s32 0, %v263
    %v265 = vrot.slane %v177, %v264
    %266 = vrot.lane.b32.xlu0 %v265, 32
    %v267 = vpop.permute.xlu0 %266
    %v269 = vmul.f32 %v259, %v267
    %271 = vrot.lane.b32.xlu0 %v260, 64
    %v272 = vpop.permute.xlu0 %271
    %v274 = vmul.f32 %v259, %v272
    %276 = vrot.lane.b32.xlu0 %v274, 32
    %v277 = vpop.permute.xlu0 %276
    %v279 = vadd.f32 %v269, %v277
    %v280 = vtanh.pop %v279
    %282 = vrot.lane.b32.xlu0 %v280, 64
    %v283 = vpop.permute.xlu0 %282
    %v285 = vmul.f32 %v259, %v283
    %287 = vrot.lane.b32.xlu0 %v285, 32
    %v288 = vpop.permute.xlu0 %287
    %vm290 = vcmask 253952
    %291 = vst.msk [vmem:[#allocation3] sm:$0x1] %vm290, %v288
    %v292 = vld [vmem:[#allocation2 + $0x1] sm:$0x1]
    %v293 = vsel %vm179, %v288, 0
    %295 = vmatprep.subr.mxu0 0.0
    %296 = vmatpush1.msra.mxu0 %v172
    %297 = vmatprep.subr.mxu0 0.0
    %298 = vmatpush1.msra.mxu0 %v173
    %299 = vmatprep.subr.mxu0 0.0
    %300 = vmatpush1.msra.mxu0 %v174
    %301 = vmatprep.subr.mxu0 0.0
    %302 = vmatpush1.msra.mxu0 %v175
    %303 = vmatprep.subr.mxu0 0.0
    %304 = vmatpush1.msra.mxu0 0.0
    %305 = vmatprep.subr.mxu0 0.0
    %306 = vmatpush1.msra.mxu0 0.0
    %307 = vmatprep.subr.mxu0 0.0
    %308 = vmatpush1.msra.mxu0 0.0
    %309 = vmatprep.subr.mxu0 0.0
    %310 = vmatpush1.msra.mxu0 0.0
    %311 = vmatprep.subr.mxu0 0.0
    %312 = vmatpush1.msra.mxu0 0.0
    %313 = vmatprep.subr.mxu0 0.0
    %314 = vmatpush1.msra.mxu0 0.0
    %315 = vmatprep.subr.mxu0 0.0
    %316 = vmatpush1.msra.mxu0 0.0
    %317 = vmatprep.subr.mxu0 0.0
    %318 = vmatpush1.msra.mxu0 0.0
    %319 = vmatprep.subr.mxu0 0.0
    %320 = vmatpush1.msra.mxu0 0.0
    %321 = vmatprep.subr.mxu0 0.0
    %322 = vmatpush1.msra.mxu0 0.0
    %323 = vmatprep.subr.mxu0 0.0
    %324 = vmatpush1.msra.mxu0 0.0
    %325 = vmatprep.subr.mxu0 0.0
    %326 = vmatpush1.msra.mxu0 0.0
    %327 = vmatprep.subr.mxu0 0.0
    %328 = vmatpush1.msra.mxu0 0.0
    %329 = vmatprep.subr.mxu0 0.0
    %330 = vmatpush1.msra.mxu0 0.0
    %331 = vmatprep.subr.mxu0 0.0
    %332 = vmatpush1.msra.mxu0 0.0
    %333 = vmatprep.subr.mxu0 0.0
    %334 = vmatpush1.msra.mxu0 0.0
    %335 = vmatprep.subr.mxu0 0.0
    %336 = vmatpush1.msra.mxu0 0.0
    %337 = vmatprep.subr.mxu0 0.0
    %338 = vmatpush1.msra.mxu0 0.0
    %339 = vmatprep.subr.mxu0 0.0
    %340 = vmatpush1.msra.mxu0 0.0
    %341 = vmatprep.subr.mxu0 0.0
    %342 = vmatpush1.msra.mxu0 0.0
    %343 = vmatprep.subr.mxu0 0.0
    %344 = vmatpush1.msra.mxu0 0.0
    %345 = vmatprep.subr.mxu0 0.0
    %346 = vmatpush1.msra.mxu0 0.0
    %347 = vmatprep.subr.mxu0 0.0
    %348 = vmatpush1.msra.mxu0 0.0
    %349 = vmatprep.subr.mxu0 0.0
    %350 = vmatpush1.msra.mxu0 0.0
    %351 = vmatprep.subr.mxu0 0.0
    %352 = vmatpush1.msra.mxu0 0.0
    %353 = vmatprep.subr.mxu0 0.0
    %354 = vmatpush1.msra.mxu0 0.0
    %355 = vmatprep.subr.mxu0 0.0
    %356 = vmatpush1.msra.mxu0 0.0
    %357 = vmatprep.subr.mxu0 0.0
    %358 = vmatpush1.msra.mxu0 0.0
    %359 = vmatprep.mubr.f32.mxu0 0.0
    %360 = vmatmul.mubr.f32.gmra.mrb[0].mxu0 %v293
    %v361 = vpop.f32.mrb[0].mxu0
    %v362 = vadd.f32 0.0, %v361
    %v363 = vpop.f32.mrb[0].mxu0
    %364 = vdwg.mxu0
    %v365 = vadd.f32 %v292, %v362
    %v366 = vxor.u32 %v365, 2147483648
    %v367 = vmul.f32 %v366, 1.442695
    %v368 = vpow.pop %v367
    %v369 = vadd.f32 %v368, 1.0
    %v370 = vrcp.pop %v369
    %v371 = vmul.f32 1.0, %v370
    %v372 = vtanh.pop %v365
    %v373 = vmul.f32 %v371, %v279
    %375 = vrot.lane.b32.xlu0 %v372, 64
    %v376 = vpop.permute.xlu0 %375
    %v378 = vmul.f32 %v371, %v376
    %380 = vrot.lane.b32.xlu0 %v378, 32
    %v381 = vpop.permute.xlu0 %380
    %v383 = vadd.f32 %v373, %v381
    %v384 = vtanh.pop %v383
    %386 = vrot.lane.b32.xlu0 %v384, 64
    %v387 = vpop.permute.xlu0 %386
    %v389 = vmul.f32 %v371, %v387
    %391 = vrot.lane.b32.xlu0 %v389, 32
    %v392 = vpop.permute.xlu0 %391
    %394 = vst.msk [vmem:[#allocation3 + $0x1] sm:$0x1] %vm290, %v392
    %v395 = vld [vmem:[#allocation2 + $0x2] sm:$0x1]
    %v396 = vsel %vm179, %v392, 0
    %398 = vmatprep.subr.mxu0 0.0
    %399 = vmatpush1.msra.mxu0 %v172
    %400 = vmatprep.subr.mxu0 0.0
    %401 = vmatpush1.msra.mxu0 %v173
    %402 = vmatprep.subr.mxu0 0.0
    %403 = vmatpush1.msra.mxu0 %v174
    %404 = vmatprep.subr.mxu0 0.0
    %405 = vmatpush1.msra.mxu0 %v175
    %406 = vmatprep.subr.mxu0 0.0
    %407 = vmatpush1.msra.mxu0 0.0
    %408 = vmatprep.subr.mxu0 0.0
    %409 = vmatpush1.msra.mxu0 0.0
    %410 = vmatprep.subr.mxu0 0.0
    %411 = vmatpush1.msra.mxu0 0.0
    %412 = vmatprep.subr.mxu0 0.0
    %413 = vmatpush1.msra.mxu0 0.0
    %414 = vmatprep.subr.mxu0 0.0
    %415 = vmatpush1.msra.mxu0 0.0
    %416 = vmatprep.subr.mxu0 0.0
    %417 = vmatpush1.msra.mxu0 0.0
    %418 = vmatprep.subr.mxu0 0.0
    %419 = vmatpush1.msra.mxu0 0.0
    %420 = vmatprep.subr.mxu0 0.0
    %421 = vmatpush1.msra.mxu0 0.0
    %422 = vmatprep.subr.mxu0 0.0
    %423 = vmatpush1.msra.mxu0 0.0
    %424 = vmatprep.subr.mxu0 0.0
    %425 = vmatpush1.msra.mxu0 0.0
    %426 = vmatprep.subr.mxu0 0.0
    %427 = vmatpush1.msra.mxu0 0.0
    %428 = vmatprep.subr.mxu0 0.0
    %429 = vmatpush1.msra.mxu0 0.0
    %430 = vmatprep.subr.mxu0 0.0
    %431 = vmatpush1.msra.mxu0 0.0
    %432 = vmatprep.subr.mxu0 0.0
    %433 = vmatpush1.msra.mxu0 0.0
    %434 = vmatprep.subr.mxu0 0.0
    %435 = vmatpush1.msra.mxu0 0.0
    %436 = vmatprep.subr.mxu0 0.0
    %437 = vmatpush1.msra.mxu0 0.0
    %438 = vmatprep.subr.mxu0 0.0
    %439 = vmatpush1.msra.mxu0 0.0
    %440 = vmatprep.subr.mxu0 0.0
    %441 = vmatpush1.msra.mxu0 0.0
    %442 = vmatprep.subr.mxu0 0.0
    %443 = vmatpush1.msra.mxu0 0.0
    %444 = vmatprep.subr.mxu0 0.0
    %445 = vmatpush1.msra.mxu0 0.0
    %446 = vmatprep.subr.mxu0 0.0
    %447 = vmatpush1.msra.mxu0 0.0
    %448 = vmatprep.subr.mxu0 0.0
    %449 = vmatpush1.msra.mxu0 0.0
    %450 = vmatprep.subr.mxu0 0.0
    %451 = vmatpush1.msra.mxu0 0.0
    %452 = vmatprep.subr.mxu0 0.0
    %453 = vmatpush1.msra.mxu0 0.0
    %454 = vmatprep.subr.mxu0 0.0
    %455 = vmatpush1.msra.mxu0 0.0
    %456 = vmatprep.subr.mxu0 0.0
    %457 = vmatpush1.msra.mxu0 0.0
    %458 = vmatprep.subr.mxu0 0.0
    %459 = vmatpush1.msra.mxu0 0.0
    %460 = vmatprep.subr.mxu0 0.0
    %461 = vmatpush1.msra.mxu0 0.0
    %462 = vmatprep.mubr.f32.mxu0 0.0
    %463 = vmatmul.mubr.f32.gmra.mrb[0].mxu0 %v396
    %v464 = vpop.f32.mrb[0].mxu0
    %v465 = vadd.f32 0.0, %v464
    %v466 = vpop.f32.mrb[0].mxu0
    %467 = vdwg.mxu0
    %v468 = vadd.f32 %v395, %v465
    %v469 = vxor.u32 %v468, 2147483648
    %v470 = vmul.f32 %v469, 1.442695
    %v471 = vpow.pop %v470
    %v472 = vadd.f32 %v471, 1.0
    %v473 = vrcp.pop %v472
    %v474 = vmul.f32 1.0, %v473
    %v475 = vtanh.pop %v468
    %v476 = vmul.f32 %v474, %v383
    %478 = vrot.lane.b32.xlu0 %v475, 64
    %v479 = vpop.permute.xlu0 %478
    %v481 = vmul.f32 %v474, %v479
    %483 = vrot.lane.b32.xlu0 %v481, 32
    %v484 = vpop.permute.xlu0 %483
    %v486 = vadd.f32 %v476, %v484
    %v487 = vtanh.pop %v486
    %489 = vrot.lane.b32.xlu0 %v487, 64
    %v490 = vpop.permute.xlu0 %489
    %v492 = vmul.f32 %v474, %v490
    %494 = vrot.lane.b32.xlu0 %v492, 32
    %v495 = vpop.permute.xlu0 %494
    %497 = vst.msk [vmem:[#allocation3 + $0x2] sm:$0x1] %vm290, %v495
    %v498 = vld [vmem:[#allocation2 + $0x3] sm:$0x1]
    %v499 = vsel %vm179, %v495, 0
    %501 = vmatprep.subr.mxu0 0.0
    %502 = vmatpush1.msra.mxu0 %v172
    %503 = vmatprep.subr.mxu0 0.0
    %504 = vmatpush1.msra.mxu0 %v173
    %505 = vmatprep.subr.mxu0 0.0
    %506 = vmatpush1.msra.mxu0 %v174
    %507 = vmatprep.subr.mxu0 0.0
    %508 = vmatpush1.msra.mxu0 %v175
    %509 = vmatprep.subr.mxu0 0.0
    %510 = vmatpush1.msra.mxu0 0.0
    %511 = vmatprep.subr.mxu0 0.0
    %512 = vmatpush1.msra.mxu0 0.0
    %513 = vmatprep.subr.mxu0 0.0
    %514 = vmatpush1.msra.mxu0 0.0
    %515 = vmatprep.subr.mxu0 0.0
    %516 = vmatpush1.msra.mxu0 0.0
    %517 = vmatprep.subr.mxu0 0.0
    %518 = vmatpush1.msra.mxu0 0.0
    %519 = vmatprep.subr.mxu0 0.0
    %520 = vmatpush1.msra.mxu0 0.0
    %521 = vmatprep.subr.mxu0 0.0
    %522 = vmatpush1.msra.mxu0 0.0
    %523 = vmatprep.subr.mxu0 0.0
    %524 = vmatpush1.msra.mxu0 0.0
    %525 = vmatprep.subr.mxu0 0.0
    %526 = vmatpush1.msra.mxu0 0.0
    %527 = vmatprep.subr.mxu0 0.0
    %528 = vmatpush1.msra.mxu0 0.0
    %529 = vmatprep.subr.mxu0 0.0
    %530 = vmatpush1.msra.mxu0 0.0
    %531 = vmatprep.subr.mxu0 0.0
    %532 = vmatpush1.msra.mxu0 0.0
    %533 = vmatprep.subr.mxu0 0.0
    %534 = vmatpush1.msra.mxu0 0.0
    %535 = vmatprep.subr.mxu0 0.0
    %536 = vmatpush1.msra.mxu0 0.0
    %537 = vmatprep.subr.mxu0 0.0
    %538 = vmatpush1.msra.mxu0 0.0
    %539 = vmatprep.subr.mxu0 0.0
    %540 = vmatpush1.msra.mxu0 0.0
    %541 = vmatprep.subr.mxu0 0.0
    %542 = vmatpush1.msra.mxu0 0.0
    %543 = vmatprep.subr.mxu0 0.0
    %544 = vmatpush1.msra.mxu0 0.0
    %545 = vmatprep.subr.mxu0 0.0
    %546 = vmatpush1.msra.mxu0 0.0
    %547 = vmatprep.subr.mxu0 0.0
    %548 = vmatpush1.msra.mxu0 0.0
    %549 = vmatprep.subr.mxu0 0.0
    %550 = vmatpush1.msra.mxu0 0.0
    %551 = vmatprep.subr.mxu0 0.0
    %552 = vmatpush1.msra.mxu0 0.0
    %553 = vmatprep.subr.mxu0 0.0
    %554 = vmatpush1.msra.mxu0 0.0
    %555 = vmatprep.subr.mxu0 0.0
    %556 = vmatpush1.msra.mxu0 0.0
    %557 = vmatprep.subr.mxu0 0.0
    %558 = vmatpush1.msra.mxu0 0.0
    %559 = vmatprep.subr.mxu0 0.0
    %560 = vmatpush1.msra.mxu0 0.0
    %561 = vmatprep.subr.mxu0 0.0
    %562 = vmatpush1.msra.mxu0 0.0
    %563 = vmatprep.subr.mxu0 0.0
    %564 = vmatpush1.msra.mxu0 0.0
    %565 = vmatprep.mubr.f32.mxu0 0.0
    %566 = vmatmul.mubr.f32.gmra.mrb[0].mxu0 %v499
    %v567 = vpop.f32.mrb[0].mxu0
    %v568 = vadd.f32 0.0, %v567
    %v569 = vpop.f32.mrb[0].mxu0
    %570 = vdwg.mxu0
    %v571 = vadd.f32 %v498, %v568
    %v572 = vxor.u32 %v571, 2147483648
    %v573 = vmul.f32 %v572, 1.442695
    %v574 = vpow.pop %v573
    %v575 = vadd.f32 %v574, 1.0
    %v576 = vrcp.pop %v575
    %v577 = vmul.f32 1.0, %v576
    %v578 = vtanh.pop %v571
    %v579 = vmul.f32 %v577, %v486
    %581 = vrot.lane.b32.xlu0 %v578, 64
    %v582 = vpop.permute.xlu0 %581
    %v584 = vmul.f32 %v577, %v582
    %586 = vrot.lane.b32.xlu0 %v584, 32
    %v587 = vpop.permute.xlu0 %586
    %v589 = vadd.f32 %v579, %v587
    %v590 = vtanh.pop %v589
    %592 = vrot.lane.b32.xlu0 %v590, 64
    %v593 = vpop.permute.xlu0 %592
    %v595 = vmul.f32 %v577, %v593
    %597 = vrot.lane.b32.xlu0 %v595, 32
    %v598 = vpop.permute.xlu0 %597
    %600 = vst.msk [vmem:[#allocation3 + $0x3] sm:$0x1] %vm290, %v598
    %v601 = vld [vmem:[#allocation2 + $0x4] sm:$0x1]
    %v602 = vsel %vm179, %v598, 0
    %604 = vmatprep.subr.mxu0 0.0
    %605 = vmatpush1.msra.mxu0 %v172
    %606 = vmatprep.subr.mxu0 0.0
    %607 = vmatpush1.msra.mxu0 %v173
    %608 = vmatprep.subr.mxu0 0.0
    %609 = vmatpush1.msra.mxu0 %v174
    %610 = vmatprep.subr.mxu0 0.0
    %611 = vmatpush1.msra.mxu0 %v175
    %612 = vmatprep.subr.mxu0 0.0
    %613 = vmatpush1.msra.mxu0 0.0
    %614 = vmatprep.subr.mxu0 0.0
    %615 = vmatpush1.msra.mxu0 0.0
    %616 = vmatprep.subr.mxu0 0.0
    %617 = vmatpush1.msra.mxu0 0.0
    %618 = vmatprep.subr.mxu0 0.0
    %619 = vmatpush1.msra.mxu0 0.0
    %620 = vmatprep.subr.mxu0 0.0
    %621 = vmatpush1.msra.mxu0 0.0
    %622 = vmatprep.subr.mxu0 0.0
    %623 = vmatpush1.msra.mxu0 0.0
    %624 = vmatprep.subr.mxu0 0.0
    %625 = vmatpush1.msra.mxu0 0.0
    %626 = vmatprep.subr.mxu0 0.0
    %627 = vmatpush1.msra.mxu0 0.0
    %628 = vmatprep.subr.mxu0 0.0
    %629 = vmatpush1.msra.mxu0 0.0
    %630 = vmatprep.subr.mxu0 0.0
    %631 = vmatpush1.msra.mxu0 0.0
    %632 = vmatprep.subr.mxu0 0.0
    %633 = vmatpush1.msra.mxu0 0.0
    %634 = vmatprep.subr.mxu0 0.0
    %635 = vmatpush1.msra.mxu0 0.0
    %636 = vmatprep.subr.mxu0 0.0
    %637 = vmatpush1.msra.mxu0 0.0
    %638 = vmatprep.subr.mxu0 0.0
    %639 = vmatpush1.msra.mxu0 0.0
    %640 = vmatprep.subr.mxu0 0.0
    %641 = vmatpush1.msra.mxu0 0.0
    %642 = vmatprep.subr.mxu0 0.0
    %643 = vmatpush1.msra.mxu0 0.0
    %644 = vmatprep.subr.mxu0 0.0
    %645 = vmatpush1.msra.mxu0 0.0
    %646 = vmatprep.subr.mxu0 0.0
    %647 = vmatpush1.msra.mxu0 0.0
    %648 = vmatprep.subr.mxu0 0.0
    %649 = vmatpush1.msra.mxu0 0.0
    %650 = vmatprep.subr.mxu0 0.0
    %651 = vmatpush1.msra.mxu0 0.0
    %652 = vmatprep.subr.mxu0 0.0
    %653 = vmatpush1.msra.mxu0 0.0
    %654 = vmatprep.subr.mxu0 0.0
    %655 = vmatpush1.msra.mxu0 0.0
    %656 = vmatprep.subr.mxu0 0.0
    %657 = vmatpush1.msra.mxu0 0.0
    %658 = vmatprep.subr.mxu0 0.0
    %659 = vmatpush1.msra.mxu0 0.0
    %660 = vmatprep.subr.mxu0 0.0
    %661 = vmatpush1.msra.mxu0 0.0
    %662 = vmatprep.subr.mxu0 0.0
    %663 = vmatpush1.msra.mxu0 0.0
    %664 = vmatprep.subr.mxu0 0.0
    %665 = vmatpush1.msra.mxu0 0.0
    %666 = vmatprep.subr.mxu0 0.0
    %667 = vmatpush1.msra.mxu0 0.0
    %668 = vmatprep.mubr.f32.mxu0 0.0
    %669 = vmatmul.mubr.f32.gmra.mrb[0].mxu0 %v602
    %v670 = vpop.f32.mrb[0].mxu0
    %v671 = vadd.f32 0.0, %v670
    %v672 = vpop.f32.mrb[0].mxu0
    %673 = vdwg.mxu0
    %v674 = vadd.f32 %v601, %v671
    %v675 = vxor.u32 %v674, 2147483648
    %v676 = vmul.f32 %v675, 1.442695
    %v677 = vpow.pop %v676
    %v678 = vadd.f32 %v677, 1.0
    %v679 = vrcp.pop %v678
    %v680 = vmul.f32 1.0, %v679
    %v681 = vtanh.pop %v674
    %v682 = vmul.f32 %v680, %v589
    %684 = vrot.lane.b32.xlu0 %v681, 64
    %v685 = vpop.permute.xlu0 %684
    %v687 = vmul.f32 %v680, %v685
    %689 = vrot.lane.b32.xlu0 %v687, 32
    %v690 = vpop.permute.xlu0 %689
    %v692 = vadd.f32 %v682, %v690
    %v693 = vtanh.pop %v692
    %695 = vrot.lane.b32.xlu0 %v693, 64
    %v696 = vpop.permute.xlu0 %695
    %v698 = vmul.f32 %v680, %v696
    %700 = vrot.lane.b32.xlu0 %v698, 32
    %v701 = vpop.permute.xlu0 %700
    %703 = vst.msk [vmem:[#allocation3 + $0x4] sm:$0x1] %vm290, %v701
    %v704 = vld [vmem:[#allocation2 + $0x5] sm:$0x1]
    %v705 = vsel %vm179, %v701, 0
    %707 = vmatprep.subr.mxu0 0.0
    %708 = vmatpush1.msra.mxu0 %v172
    %709 = vmatprep.subr.mxu0 0.0
    %710 = vmatpush1.msra.mxu0 %v173
    %711 = vmatprep.subr.mxu0 0.0
    %712 = vmatpush1.msra.mxu0 %v174
    %713 = vmatprep.subr.mxu0 0.0
    %714 = vmatpush1.msra.mxu0 %v175
    %715 = vmatprep.subr.mxu0 0.0
    %716 = vmatpush1.msra.mxu0 0.0
    %717 = vmatprep.subr.mxu0 0.0
    %718 = vmatpush1.msra.mxu0 0.0
    %719 = vmatprep.subr.mxu0 0.0
    %720 = vmatpush1.msra.mxu0 0.0
    %721 = vmatprep.subr.mxu0 0.0
    %722 = vmatpush1.msra.mxu0 0.0
    %723 = vmatprep.subr.mxu0 0.0
    %724 = vmatpush1.msra.mxu0 0.0
    %725 = vmatprep.subr.mxu0 0.0
    %726 = vmatpush1.msra.mxu0 0.0
    %727 = vmatprep.subr.mxu0 0.0
    %728 = vmatpush1.msra.mxu0 0.0
    %729 = vmatprep.subr.mxu0 0.0
    %730 = vmatpush1.msra.mxu0 0.0
    %731 = vmatprep.subr.mxu0 0.0
    %732 = vmatpush1.msra.mxu0 0.0
    %733 = vmatprep.subr.mxu0 0.0
    %734 = vmatpush1.msra.mxu0 0.0
    %735 = vmatprep.subr.mxu0 0.0
    %736 = vmatpush1.msra.mxu0 0.0
    %737 = vmatprep.subr.mxu0 0.0
    %738 = vmatpush1.msra.mxu0 0.0
    %739 = vmatprep.subr.mxu0 0.0
    %740 = vmatpush1.msra.mxu0 0.0
    %741 = vmatprep.subr.mxu0 0.0
    %742 = vmatpush1.msra.mxu0 0.0
    %743 = vmatprep.subr.mxu0 0.0
    %744 = vmatpush1.msra.mxu0 0.0
    %745 = vmatprep.subr.mxu0 0.0
    %746 = vmatpush1.msra.mxu0 0.0
    %747 = vmatprep.subr.mxu0 0.0
    %748 = vmatpush1.msra.mxu0 0.0
    %749 = vmatprep.subr.mxu0 0.0
    %750 = vmatpush1.msra.mxu0 0.0
    %751 = vmatprep.subr.mxu0 0.0
    %752 = vmatpush1.msra.mxu0 0.0
    %753 = vmatprep.subr.mxu0 0.0
    %754 = vmatpush1.msra.mxu0 0.0
    %755 = vmatprep.subr.mxu0 0.0
    %756 = vmatpush1.msra.mxu0 0.0
    %757 = vmatprep.subr.mxu0 0.0
    %758 = vmatpush1.msra.mxu0 0.0
    %759 = vmatprep.subr.mxu0 0.0
    %760 = vmatpush1.msra.mxu0 0.0
    %761 = vmatprep.subr.mxu0 0.0
    %762 = vmatpush1.msra.mxu0 0.0
    %763 = vmatprep.subr.mxu0 0.0
    %764 = vmatpush1.msra.mxu0 0.0
    %765 = vmatprep.subr.mxu0 0.0
    %766 = vmatpush1.msra.mxu0 0.0
    %767 = vmatprep.subr.mxu0 0.0
    %768 = vmatpush1.msra.mxu0 0.0
    %769 = vmatprep.subr.mxu0 0.0
    %770 = vmatpush1.msra.mxu0 0.0
    %771 = vmatprep.mubr.f32.mxu0 0.0
    %772 = vmatmul.mubr.f32.gmra.mrb[0].mxu0 %v705
    %v773 = vpop.f32.mrb[0].mxu0
    %v774 = vadd.f32 0.0, %v773
    %v775 = vpop.f32.mrb[0].mxu0
    %776 = vdwg.mxu0
    %v777 = vadd.f32 %v704, %v774
    %v778 = vxor.u32 %v777, 2147483648
    %v779 = vmul.f32 %v778, 1.442695
    %v780 = vpow.pop %v779
    %v781 = vadd.f32 %v780, 1.0
    %v782 = vrcp.pop %v781
    %v783 = vmul.f32 1.0, %v782
    %v784 = vtanh.pop %v777
    %v785 = vmul.f32 %v783, %v692
    %787 = vrot.lane.b32.xlu0 %v784, 64
    %v788 = vpop.permute.xlu0 %787
    %v790 = vmul.f32 %v783, %v788
    %792 = vrot.lane.b32.xlu0 %v790, 32
    %v793 = vpop.permute.xlu0 %792
    %v795 = vadd.f32 %v785, %v793
    %v796 = vtanh.pop %v795
    %798 = vrot.lane.b32.xlu0 %v796, 64
    %v799 = vpop.permute.xlu0 %798
    %v801 = vmul.f32 %v783, %v799
    %803 = vrot.lane.b32.xlu0 %v801, 32
    %v804 = vpop.permute.xlu0 %803
    %806 = vst.msk [vmem:[#allocation3 + $0x5] sm:$0x1] %vm290, %v804
    %v807 = vld [vmem:[#allocation2 + $0x6] sm:$0x1]
    %v808 = vsel %vm179, %v804, 0
    %810 = vmatprep.subr.mxu0 0.0
    %811 = vmatpush1.msra.mxu0 %v172
    %812 = vmatprep.subr.mxu0 0.0
    %813 = vmatpush1.msra.mxu0 %v173
    %814 = vmatprep.subr.mxu0 0.0
    %815 = vmatpush1.msra.mxu0 %v174
    %816 = vmatprep.subr.mxu0 0.0
    %817 = vmatpush1.msra.mxu0 %v175
    %818 = vmatprep.subr.mxu0 0.0
    %819 = vmatpush1.msra.mxu0 0.0
    %820 = vmatprep.subr.mxu0 0.0
    %821 = vmatpush1.msra.mxu0 0.0
    %822 = vmatprep.subr.mxu0 0.0
    %823 = vmatpush1.msra.mxu0 0.0
    %824 = vmatprep.subr.mxu0 0.0
    %825 = vmatpush1.msra.mxu0 0.0
    %826 = vmatprep.subr.mxu0 0.0
    %827 = vmatpush1.msra.mxu0 0.0
    %828 = vmatprep.subr.mxu0 0.0
    %829 = vmatpush1.msra.mxu0 0.0
    %830 = vmatprep.subr.mxu0 0.0
    %831 = vmatpush1.msra.mxu0 0.0
    %832 = vmatprep.subr.mxu0 0.0
    %833 = vmatpush1.msra.mxu0 0.0
    %834 = vmatprep.subr.mxu0 0.0
    %835 = vmatpush1.msra.mxu0 0.0
    %836 = vmatprep.subr.mxu0 0.0
    %837 = vmatpush1.msra.mxu0 0.0
    %838 = vmatprep.subr.mxu0 0.0
    %839 = vmatpush1.msra.mxu0 0.0
    %840 = vmatprep.subr.mxu0 0.0
    %841 = vmatpush1.msra.mxu0 0.0
    %842 = vmatprep.subr.mxu0 0.0
    %843 = vmatpush1.msra.mxu0 0.0
    %844 = vmatprep.subr.mxu0 0.0
    %845 = vmatpush1.msra.mxu0 0.0
    %846 = vmatprep.subr.mxu0 0.0
    %847 = vmatpush1.msra.mxu0 0.0
    %848 = vmatprep.subr.mxu0 0.0
    %849 = vmatpush1.msra.mxu0 0.0
    %850 = vmatprep.subr.mxu0 0.0
    %851 = vmatpush1.msra.mxu0 0.0
    %852 = vmatprep.subr.mxu0 0.0
    %853 = vmatpush1.msra.mxu0 0.0
    %854 = vmatprep.subr.mxu0 0.0
    %855 = vmatpush1.msra.mxu0 0.0
    %856 = vmatprep.subr.mxu0 0.0
    %857 = vmatpush1.msra.mxu0 0.0
    %858 = vmatprep.subr.mxu0 0.0
    %859 = vmatpush1.msra.mxu0 0.0
    %860 = vmatprep.subr.mxu0 0.0
    %861 = vmatpush1.msra.mxu0 0.0
    %862 = vmatprep.subr.mxu0 0.0
    %863 = vmatpush1.msra.mxu0 0.0
    %864 = vmatprep.subr.mxu0 0.0
    %865 = vmatpush1.msra.mxu0 0.0
    %866 = vmatprep.subr.mxu0 0.0
    %867 = vmatpush1.msra.mxu0 0.0
    %868 = vmatprep.subr.mxu0 0.0
    %869 = vmatpush1.msra.mxu0 0.0
    %870 = vmatprep.subr.mxu0 0.0
    %871 = vmatpush1.msra.mxu0 0.0
    %872 = vmatprep.subr.mxu0 0.0
    %873 = vmatpush1.msra.mxu0 0.0
    %874 = vmatprep.mubr.f32.mxu0 0.0
    %875 = vmatmul.mubr.f32.gmra.mrb[0].mxu0 %v808
    %v876 = vpop.f32.mrb[0].mxu0
    %v877 = vadd.f32 0.0, %v876
    %v878 = vpop.f32.mrb[0].mxu0
    %879 = vdwg.mxu0
    %v880 = vadd.f32 %v807, %v877
    %v881 = vxor.u32 %v880, 2147483648
    %v882 = vmul.f32 %v881, 1.442695
    %v883 = vpow.pop %v882
    %v884 = vadd.f32 %v883, 1.0
    %v885 = vrcp.pop %v884
    %v886 = vmul.f32 1.0, %v885
    %v887 = vtanh.pop %v880
    %v888 = vmul.f32 %v886, %v795
    %890 = vrot.lane.b32.xlu0 %v887, 64
    %v891 = vpop.permute.xlu0 %890
    %v893 = vmul.f32 %v886, %v891
    %895 = vrot.lane.b32.xlu0 %v893, 32
    %v896 = vpop.permute.xlu0 %895
    %v898 = vadd.f32 %v888, %v896
    %v899 = vtanh.pop %v898
    %901 = vrot.lane.b32.xlu0 %v899, 64
    %v902 = vpop.permute.xlu0 %901
    %v904 = vmul.f32 %v886, %v902
    %906 = vrot.lane.b32.xlu0 %v904, 32
    %v907 = vpop.permute.xlu0 %906
    %909 = vst.msk [vmem:[#allocation3 + $0x6] sm:$0x1] %vm290, %v907
    %v910 = vld [vmem:[#allocation2 + $0x7] sm:$0x1]
    %v911 = vsel %vm179, %v907, 0
    %913 = vmatprep.subr.mxu0 0.0
    %914 = vmatpush1.msra.mxu0 %v172
    %915 = vmatprep.subr.mxu0 0.0
    %916 = vmatpush1.msra.mxu0 %v173
    %917 = vmatprep.subr.mxu0 0.0
    %918 = vmatpush1.msra.mxu0 %v174
    %919 = vmatprep.subr.mxu0 0.0
    %920 = vmatpush1.msra.mxu0 %v175
    %921 = vmatprep.subr.mxu0 0.0
    %922 = vmatpush1.msra.mxu0 0.0
    %923 = vmatprep.subr.mxu0 0.0
    %924 = vmatpush1.msra.mxu0 0.0
    %925 = vmatprep.subr.mxu0 0.0
    %926 = vmatpush1.msra.mxu0 0.0
    %927 = vmatprep.subr.mxu0 0.0
    %928 = vmatpush1.msra.mxu0 0.0
    %929 = vmatprep.subr.mxu0 0.0
    %930 = vmatpush1.msra.mxu0 0.0
    %931 = vmatprep.subr.mxu0 0.0
    %932 = vmatpush1.msra.mxu0 0.0
    %933 = vmatprep.subr.mxu0 0.0
    %934 = vmatpush1.msra.mxu0 0.0
    %935 = vmatprep.subr.mxu0 0.0
    %936 = vmatpush1.msra.mxu0 0.0
    %937 = vmatprep.subr.mxu0 0.0
    %938 = vmatpush1.msra.mxu0 0.0
    %939 = vmatprep.subr.mxu0 0.0
    %940 = vmatpush1.msra.mxu0 0.0
    %941 = vmatprep.subr.mxu0 0.0
    %942 = vmatpush1.msra.mxu0 0.0
    %943 = vmatprep.subr.mxu0 0.0
    %944 = vmatpush1.msra.mxu0 0.0
    %945 = vmatprep.subr.mxu0 0.0
    %946 = vmatpush1.msra.mxu0 0.0
    %947 = vmatprep.subr.mxu0 0.0
    %948 = vmatpush1.msra.mxu0 0.0
    %949 = vmatprep.subr.mxu0 0.0
    %950 = vmatpush1.msra.mxu0 0.0
    %951 = vmatprep.subr.mxu0 0.0
    %952 = vmatpush1.msra.mxu0 0.0
    %953 = vmatprep.subr.mxu0 0.0
    %954 = vmatpush1.msra.mxu0 0.0
    %955 = vmatprep.subr.mxu0 0.0
    %956 = vmatpush1.msra.mxu0 0.0
    %957 = vmatprep.subr.mxu0 0.0
    %958 = vmatpush1.msra.mxu0 0.0
    %959 = vmatprep.subr.mxu0 0.0
    %960 = vmatpush1.msra.mxu0 0.0
    %961 = vmatprep.subr.mxu0 0.0
    %962 = vmatpush1.msra.mxu0 0.0
    %963 = vmatprep.subr.mxu0 0.0
    %964 = vmatpush1.msra.mxu0 0.0
    %965 = vmatprep.subr.mxu0 0.0
    %966 = vmatpush1.msra.mxu0 0.0
    %967 = vmatprep.subr.mxu0 0.0
    %968 = vmatpush1.msra.mxu0 0.0
    %969 = vmatprep.subr.mxu0 0.0
    %970 = vmatpush1.msra.mxu0 0.0
    %971 = vmatprep.subr.mxu0 0.0
    %972 = vmatpush1.msra.mxu0 0.0
    %973 = vmatprep.subr.mxu0 0.0
    %974 = vmatpush1.msra.mxu0 0.0
    %975 = vmatprep.subr.mxu0 0.0
    %976 = vmatpush1.msra.mxu0 0.0
    %977 = vmatprep.mubr.f32.mxu0 0.0
    %978 = vmatmul.mubr.f32.gmra.mrb[0].mxu0 %v911
    %v979 = vpop.f32.mrb[0].mxu0
    %v980 = vadd.f32 0.0, %v979
    %v981 = vpop.f32.mrb[0].mxu0
    %982 = vdwg.mxu0
    %v983 = vadd.f32 %v910, %v980
    %v984 = vxor.u32 %v983, 2147483648
    %v985 = vmul.f32 %v984, 1.442695
    %v986 = vpow.pop %v985
    %v987 = vadd.f32 %v986, 1.0
    %v988 = vrcp.pop %v987
    %v989 = vmul.f32 1.0, %v988
    %v990 = vtanh.pop %v983
    %v991 = vmul.f32 %v989, %v898
    %993 = vrot.lane.b32.xlu0 %v990, 64
    %v994 = vpop.permute.xlu0 %993
    %v996 = vmul.f32 %v989, %v994
    %998 = vrot.lane.b32.xlu0 %v996, 32
    %v999 = vpop.permute.xlu0 %998
    %v1001 = vadd.f32 %v991, %v999
    %v1002 = vtanh.pop %v1001
    %1004 = vrot.lane.b32.xlu0 %v1002, 64
    %v1005 = vpop.permute.xlu0 %1004
    %v1007 = vmul.f32 %v989, %v1005
    %1009 = vrot.lane.b32.xlu0 %v1007, 32
    %v1010 = vpop.permute.xlu0 %1009
    %1012 = vst.msk [vmem:[#allocation3 + $0x7] sm:$0x1] %vm290, %v1010
    %1013 = vst.msk [vmem:[#allocation13] sm:$0x1] %vm290, %v1010
    %1015 = vrot.lane.b32.xlu0 %v1001, 96
    %v1016 = vpop.permute.xlu0 %1015
    %1018 = vst.msk [vmem:[#allocation15] sm:$0x1] %vm290, %v1016
    %v1019 = vld [vmem:[#allocation3] sm:$0xff]
    %v1020 = vld [vmem:[#allocation10] sm:$0xff]
    %v1021 = vld [vmem:[#allocation10 + $0x8] sm:$0xff]
    %v1022 = vld [vmem:[#allocation10 + $0x10] sm:$0xff]
    %v1023 = vld [vmem:[#allocation10 + $0x18] sm:$0xff]
    %v1024 = vld [vmem:[%s7] sm:$0x1]
    %v1026 = vlaneseq
    %v1027 = vshrl.u32 %v1026, 7
    %v1028 = vsub.s32 0, %v1027
    %v1029 = vrot.slane %v1024, %v1028
    %v1032 = vsel %vm179, %v1019, 0
    %1034 = vmatprep.subr.mxu0 0.0
    %1035 = vmatpush1.msra.mxu0 %v1020
    %1036 = vmatprep.subr.mxu0 0.0
    %1037 = vmatpush1.msra.mxu0 %v1021
    %1038 = vmatprep.subr.mxu0 0.0
    %1039 = vmatpush1.msra.mxu0 %v1022
    %1040 = vmatprep.subr.mxu0 0.0
    %1041 = vmatpush1.msra.mxu0 %v1023
    %1042 = vmatprep.subr.mxu0 0.0
    %1043 = vmatpush1.msra.mxu0 0.0
    %1044 = vmatprep.subr.mxu0 0.0
    %1045 = vmatpush1.msra.mxu0 0.0
    %1046 = vmatprep.subr.mxu0 0.0
    %1047 = vmatpush1.msra.mxu0 0.0
    %1048 = vmatprep.subr.mxu0 0.0
    %1049 = vmatpush1.msra.mxu0 0.0
    %1050 = vmatprep.subr.mxu0 0.0
    %1051 = vmatpush1.msra.mxu0 0.0
    %1052 = vmatprep.subr.mxu0 0.0
    %1053 = vmatpush1.msra.mxu0 0.0
    %1054 = vmatprep.subr.mxu0 0.0
    %1055 = vmatpush1.msra.mxu0 0.0
    %1056 = vmatprep.subr.mxu0 0.0
    %1057 = vmatpush1.msra.mxu0 0.0
    %1058 = vmatprep.subr.mxu0 0.0
    %1059 = vmatpush1.msra.mxu0 0.0
    %1060 = vmatprep.subr.mxu0 0.0
    %1061 = vmatpush1.msra.mxu0 0.0
    %1062 = vmatprep.subr.mxu0 0.0
    %1063 = vmatpush1.msra.mxu0 0.0
    %1064 = vmatprep.subr.mxu0 0.0
    %1065 = vmatpush1.msra.mxu0 0.0
    %1066 = vmatprep.subr.mxu0 0.0
    %1067 = vmatpush1.msra.mxu0 0.0
    %1068 = vmatprep.subr.mxu0 0.0
    %1069 = vmatpush1.msra.mxu0 0.0
    %1070 = vmatprep.subr.mxu0 0.0
    %1071 = vmatpush1.msra.mxu0 0.0
    %1072 = vmatprep.subr.mxu0 0.0
    %1073 = vmatpush1.msra.mxu0 0.0
    %1074 = vmatprep.subr.mxu0 0.0
    %1075 = vmatpush1.msra.mxu0 0.0
    %1076 = vmatprep.subr.mxu0 0.0
    %1077 = vmatpush1.msra.mxu0 0.0
    %1078 = vmatprep.subr.mxu0 0.0
    %1079 = vmatpush1.msra.mxu0 0.0
    %1080 = vmatprep.subr.mxu0 0.0
    %1081 = vmatpush1.msra.mxu0 0.0
    %1082 = vmatprep.subr.mxu0 0.0
    %1083 = vmatpush1.msra.mxu0 0.0
    %1084 = vmatprep.subr.mxu0 0.0
    %1085 = vmatpush1.msra.mxu0 0.0
    %1086 = vmatprep.subr.mxu0 0.0
    %1087 = vmatpush1.msra.mxu0 0.0
    %1088 = vmatprep.subr.mxu0 0.0
    %1089 = vmatpush1.msra.mxu0 0.0
    %1090 = vmatprep.subr.mxu0 0.0
    %1091 = vmatpush1.msra.mxu0 0.0
    %1092 = vmatprep.subr.mxu0 0.0
    %1093 = vmatpush1.msra.mxu0 0.0
    %1094 = vmatprep.subr.mxu0 0.0
    %1095 = vmatpush1.msra.mxu0 0.0
    %1096 = vmatprep.subr.mxu0 0.0
    %1097 = vmatpush1.msra.mxu0 0.0
    %1098 = vmatprep.mubr.f32.mxu0 0.0
    %1099 = vmatmul.mubr.f32.gmra.mrb[0].mxu0 %v1032
    %v1100 = vpop.f32.mrb[0].mxu0
    %v1101 = vadd.f32 %v1029, %v1100
    %v1102 = vpop.f32.mrb[0].mxu0
    %1103 = vdwg.mxu0
    %1104 = vmax.xlane.f32.xlu0 %v1101
    %v1105 = vpop.xlane.xlu0 %1104
    %v1106 = vsub.f32 %v1101, %v1105
    %v1107 = vmul.f32 %v1106, 1.442695
    %v1108 = vpow.pop %v1107
    %1109 = vadd.xlane.f32.xlu0 %v1108
    %v1110 = vpop.xlane.xlu0 %1109
    %v1111 = vlog2.pop %v1110
    %v1112 = vmul.f32 %v1111, 0.6931472
    %v1113 = vsub.f32 %v1106, %v1112
    %1114 = vst [vmem:[#allocation12] sm:$0xff] %v1113
    // Predicated region
    $region50: #{tpu_custom_call.1} parent=1 // pred_check
      _
    $region51: #{tpu_custom_call.1} parent=1 // pred_check_branch
      %1116 = sbr.rel (0) target = $region53
    $region52: #{tpu_custom_call.1} parent=1 // pred_region
      %s1118 = ssub.s32 128, 128
      %1119 = vsyncadd [#allocation6], %s1118
      %s1121 = sshll.u32 [#allocation12], 4
      %s1122 = int_to_ptr.vmem [resolvable:$true] %s1121
      %1124 = dma.vmem_to_hbm [thread:$0]  %s1122, 128, %s8, [#allocation6]
    $region53: #{tpu_custom_call.1} parent=1 // pred_fallthru
      _
    // Predicated region
    $region54: #{tpu_custom_call.1} parent=1 // pred_check
      _
    $region55: #{tpu_custom_call.1} parent=1 // pred_check_branch
      %1126 = sbr.rel (0) target = $region57
    $region56: #{tpu_custom_call.1} parent=1 // pred_region
      %s1128 = ssub.s32 16, 16
      %1129 = vsyncadd [#allocation14], %s1128
      %s1131 = sshll.u32 [#allocation13], 4
      %s1132 = int_to_ptr.vmem [resolvable:$true] %s1131
      %1134 = dma.vmem_to_hbm [thread:$0]  %s1132, 16, %s9, [#allocation14]
    $region57: #{tpu_custom_call.1} parent=1 // pred_fallthru
      _
    // Predicated region
    $region58: #{tpu_custom_call.1} parent=1 // pred_check
      _
    $region59: #{tpu_custom_call.1} parent=1 // pred_check_branch
      %1136 = sbr.rel (0) target = $region61
    $region60: #{tpu_custom_call.1} parent=1 // pred_region
      %s1138 = ssub.s32 16, 16
      %1139 = vsyncadd [#allocation14], %s1138
      %s1141 = sshll.u32 [#allocation15], 4
      %s1142 = int_to_ptr.vmem [resolvable:$true] %s1141
      %1144 = dma.vmem_to_hbm [thread:$0]  %s1142, 16, %s10, [#allocation14]
    $region61: #{tpu_custom_call.1} parent=1 // pred_fallthru
      _
    // Predicated region
    $region62: #{tpu_custom_call.1} parent=1 // pred_check
      _
    $region63: #{tpu_custom_call.1} parent=1 // pred_check_branch
      %1146 = sbr.rel (0) target = $region65
    $region64: #{tpu_custom_call.1} parent=1 // pred_region
      %1147 = dma.done [#allocation6], 128
    $region65: #{tpu_custom_call.1} parent=1 // pred_fallthru
      _
    // Predicated region
    $region66: #{tpu_custom_call.1} parent=1 // pred_check
      _
    $region67: #{tpu_custom_call.1} parent=1 // pred_check_branch
      %1149 = sbr.rel (0) target = $region69
    $region68: #{tpu_custom_call.1} parent=1 // pred_region
      %1150 = dma.done [#allocation14], 16
    $region69: #{tpu_custom_call.1} parent=1 // pred_fallthru
      _
    // Predicated region
    $region70: #{tpu_custom_call.1} parent=1 // pred_check
      _
    $region71: #{tpu_custom_call.1} parent=1 // pred_check_branch
      %1152 = sbr.rel (0) target = $region73
    $region72: #{tpu_custom_call.1} parent=1 // pred_region
      %1153 = dma.done [#allocation14], 16
    $region73: #{tpu_custom_call.1} parent=1 // pred_fallthru
      _
    %1154 = vsyncpa [#allocation5], 1
    %1155 = vsyncpa [#allocation8], 1
    %1156 = vsyncpa [#allocation11], 1
    %1157 = vsyncpa [#allocation6], 1
    %1158 = vsyncpa [#allocation14], 1

</llo_original>
